<compile_context>
chip_gen: v7x
topology: tpu7x:2x2x1
jax: 0.10.0
libtpu: 0.0.40
codegen_flags: <defaults>
</compile_context>

<pallas_src>
import functools

import jax
import jax.numpy as jnp
import numpy as np
from jax.experimental import pallas as pl
from jax.experimental.pallas import tpu as pltpu


def _round_up(x, m):
    return ((x + m - 1) // m) * m


# ----------------------------- Pallas kernels -------------------------------

def _gemm_bias_kernel(x_ref, w_ref, b_ref, o_ref, *, relu):
    acc = jnp.dot(x_ref[...], w_ref[...], preferred_element_type=jnp.float32)
    acc = acc + b_ref[...]
    if relu:
        acc = jnp.maximum(acc, 0.0)
    o_ref[...] = acc.astype(o_ref.dtype)


def gemm_bias(x, w, b, relu=False, tm_max=512):
    """(M, K) @ (K, N) + b, optional ReLU.

    K is zero-padded to a multiple of 128; M uses large tiles and is padded so
    the grid always divides evenly (no `M % tm == 0` assert)."""
    M, K = x.shape
    Kw, N = w.shape
    assert K == Kw
    Kp = _round_up(max(K, 128), 128)
    if Kp != K:
        x = jnp.pad(x, ((0, 0), (0, Kp - K)))
        w = jnp.pad(w, ((0, Kp - K), (0, 0)))
    tm = min(tm_max, _round_up(M, 8))
    Mp = _round_up(M, tm)
    if Mp != M:
        x = jnp.pad(x, ((0, Mp - M), (0, 0)))
    out = pl.pallas_call(
        functools.partial(_gemm_bias_kernel, relu=relu),
        out_shape=jax.ShapeDtypeStruct((Mp, N), jnp.float32),
        grid=(Mp // tm,),
        in_specs=[
            pl.BlockSpec((tm, Kp), lambda i: (i, 0)),
            pl.BlockSpec((Kp, N), lambda i: (0, 0)),
            pl.BlockSpec((1, N), lambda i: (0, 0)),
        ],
        out_specs=pl.BlockSpec((tm, N), lambda i: (i, 0)),
        compiler_params=pltpu.CompilerParams(dimension_semantics=("parallel",)),
    )(x, w, b.reshape(1, N))
    return out[:M] if Mp != M else out


def _attn_kernel(feat_ref, wq_ref, bq_ref, wk_ref, bk_ref, wv_ref, bv_ref, o_ref):
    """Per-batch fused q/k/v projection + softmax attention.

    feat is the channel-concatenated [mono_feat | multi_feat] map (hw, 2*mid);
    q/k weights are zero on the multi rows and v weights zero on the mono rows,
    so no in-kernel channel slicing is needed."""
    feat = feat_ref[0]                                                # (hw, 2*mid)
    q = jnp.dot(feat, wq_ref[...], preferred_element_type=jnp.float32) + bq_ref[...]
    k = jnp.dot(feat, wk_ref[...], preferred_element_type=jnp.float32) + bk_ref[...]
    v = jnp.dot(feat, wv_ref[...], preferred_element_type=jnp.float32) + bv_ref[...]
    # scores = q @ k^T without ever materialising a transposed k.
    s = jax.lax.dot_general(q, k, (((1,), (1,)), ((), ())),
                            preferred_element_type=jnp.float32)       # (hw, hw)
    s = s - jnp.max(s, axis=-1, keepdims=True)
    p = jnp.exp(s)
    denom = jnp.sum(p, axis=-1, keepdims=True)
    out = jnp.dot(p, v, preferred_element_type=jnp.float32)           # (hw, mid)
    # softmax normalisation folded after @v; divide goes to the EUP slot.
    o_ref[0] = (out * pl.reciprocal(denom, approx=True)).astype(o_ref.dtype)


def fused_qkv_attention(feat, wq, bq, wk, bk, wv, bv):
    """feat: (B, hw, 2*mid) -> softmax(q@k^T) @ v : (B, hw, mid)."""
    B, HW, C2 = feat.shape
    KQ = wq.shape[1]
    MID = wv.shape[1]
    # TODO(synk): for realistic resolutions (hw >~ 4k) convert this to a
    # flash-style streamed softmax over KV tiles so the (hw, hw) score tile
    # never exceeds VMEM (32 MiB default scoped limit; 64 MiB physical on v7x).
    return pl.pallas_call(
        _attn_kernel,
        out_shape=jax.ShapeDtypeStruct((B, HW, MID), jnp.float32),
        grid=(B,),
        in_specs=[
            pl.BlockSpec((1, HW, C2), lambda i: (i, 0, 0)),
            pl.BlockSpec((C2, KQ), lambda i: (0, 0)),
            pl.BlockSpec((1, KQ), lambda i: (0, 0)),
            pl.BlockSpec((C2, KQ), lambda i: (0, 0)),
            pl.BlockSpec((1, KQ), lambda i: (0, 0)),
            pl.BlockSpec((C2, MID), lambda i: (0, 0)),
            pl.BlockSpec((1, MID), lambda i: (0, 0)),
        ],
        out_specs=pl.BlockSpec((1, HW, MID), lambda i: (i, 0, 0)),
        compiler_params=pltpu.CompilerParams(dimension_semantics=("parallel",)),
    )(feat, wq, bq.reshape(1, KQ), wk, bk.reshape(1, KQ), wv, bv.reshape(1, MID))


def _epilogue_kernel(gamma_ref, cv_ref, low_ref, w_ref, b_ref, o_ref, *, scale, width):
    """ReLU(cv @ w_reg + b_reg) + gamma * nearest_upsample(attention_out)."""
    res = jnp.dot(cv_ref[...], w_ref[...], preferred_element_type=jnp.float32)
    res = jnp.maximum(res + b_ref[...], 0.0)                          # (tl*scale*W, mid)
    low = low_ref[...]                                                # (tl*W, mid)
    rows_lo, mid = low.shape
    tl = rows_lo // width
    # replicate each low-res row group `scale` times (nearest along H); pure
    # in-register broadcast + layout-free reshapes (width is a multiple of 8).
    up = jnp.broadcast_to(low.reshape(tl, 1, width, mid),
                          (tl, scale, width, mid)).reshape(tl * scale * width, mid)
    o_ref[...] = res + gamma_ref[0] * up


def fused_epilogue(cv_nhwc, low_nhwc, w_reg, b_reg, gamma, scale):
    B, H, W, C = cv_nhwc.shape
    _, h, w_lo, MID = low_nhwc.shape
    assert H == scale * h and W == scale * w_lo, "nearest upsample assumes exact ratio"
    # Width replication once on the tiny low-res map (still `scale`x smaller
    # than the full-res `up`, which is never written to HBM).
    low_wexp = jnp.repeat(low_nhwc, scale, axis=2).reshape(B * h * W, MID)
    cv_flat = cv_nhwc.reshape(B * H * W, C)
    # tl low-res rows per grid step: keep blocks <= ~1 MiB and dividing h.
    tl = h
    while tl > 1 and ((h % tl) or (tl * scale * W * max(C, MID) * 4 > (1 << 20))):
        tl -= 1
    rows_hi = tl * scale * W
    rows_lo = tl * W
    nblk = B * (h // tl)
    out = pl.pallas_call(
        functools.partial(_epilogue_kernel, scale=scale, width=W),
        out_shape=jax.ShapeDtypeStruct((B * H * W, MID), jnp.float32),
        grid=(nblk,),
        in_specs=[
            pl.BlockSpec(memory_space=pltpu.MemorySpace.SMEM),        # gamma (1,)
            pl.BlockSpec((rows_hi, C), lambda i: (i, 0)),
            pl.BlockSpec((rows_lo, MID), lambda i: (i, 0)),
            pl.BlockSpec((C, MID), lambda i: (0, 0)),
            pl.BlockSpec((1, MID), lambda i: (0, 0)),
        ],
        out_specs=pl.BlockSpec((rows_hi, MID), lambda i: (i, 0)),
        compiler_params=pltpu.CompilerParams(dimension_semantics=("parallel",)),
    )(gamma, cv_flat, low_wexp, w_reg, b_reg.reshape(1, MID))
    return out.reshape(B, H, W, MID)


# ------------------------------ JAX glue ------------------------------------

def im2col_3x3_s2(x):
    """x: (B, H, W, C) -> patches (B*ho*wo, 9*C) for k=3, stride=2, pad=1."""
    B, H, W, C = x.shape
    xp = jnp.pad(x, ((0, 0), (1, 1), (1, 1), (0, 0)))
    ho = (H - 1) // 2 + 1
    wo = (W - 1) // 2 + 1
    cols = []
    for ky in range(3):
        for kx in range(3):
            cols.append(xp[:, ky:ky + 2 * ho:2, kx:kx + 2 * wo:2, :])
    patches = jnp.concatenate(cols, axis=-1)   # (B, ho, wo, 9*C) in (ky,kx,C) order
    return patches.reshape(B * ho * wo, 9 * C), ho, wo


def blockdiag_conv_weights(wm, bm, wu, bu):
    """Per-tap block-diagonal weight so the mono & multi 3x3 convs run as a
    single GEMM on the channel-concatenated [mono | multi] feature map."""
    kh, kw, cin, cout = wm.shape
    z = jnp.zeros((kh, kw, cin, cout), wm.dtype)
    top = jnp.concatenate([wm, z], axis=-1)      # mono input channels
    bot = jnp.concatenate([z, wu], axis=-1)      # multi input channels
    w = jnp.concatenate([top, bot], axis=-2)     # (3, 3, 2*cin, 2*cout)
    return w.reshape(kh * kw * 2 * cin, 2 * cout), jnp.concatenate([bm, bu])


def fold_bn(w, b, bn_g, bn_b, bn_mean, bn_var, eps=1e-5):
    """Fold eval-mode BatchNorm into conv weight (..., Cout) and bias (Cout,)."""
    s = bn_g / jnp.sqrt(bn_var + eps)
    return w * s, (b - bn_mean) * s + bn_b


def make_params(cv_hypo, mid, kq, key):
    keys = iter(jax.random.split(key, 64))

    def conv3x3_bn(cin, cout):
        w = 0.1 * jax.random.normal(next(keys), (3, 3, cin, cout), jnp.float32)
        b = 0.05 * jax.random.normal(next(keys), (cout,), jnp.float32)
        g = 1.0 + 0.1 * jax.random.normal(next(keys), (cout,), jnp.float32)
        beta = 0.05 * jax.random.normal(next(keys), (cout,), jnp.float32)
        mean = 0.1 * jax.random.normal(next(keys), (cout,), jnp.float32)
        var = 1.0 + 0.1 * jnp.abs(jax.random.normal(next(keys), (cout,), jnp.float32))
        return fold_bn(w, b, g, beta, mean, var)

    def conv1x1(cin, cout):
        w = 0.1 * jax.random.normal(next(keys), (cin, cout), jnp.float32)
        b = 0.05 * jax.random.normal(next(keys), (cout,), jnp.float32)
        return w, b

    def conv1x1_bn(cin, cout):
        w, b = conv1x1(cin, cout)
        g = 1.0 + 0.1 * jax.random.normal(next(keys), (cout,), jnp.float32)
        beta = 0.05 * jax.random.normal(next(keys), (cout,), jnp.float32)
        mean = 0.1 * jax.random.normal(next(keys), (cout,), jnp.float32)
        var = 1.0 + 0.1 * jnp.abs(jax.random.normal(next(keys), (cout,), jnp.float32))
        return fold_bn(w, b, g, beta, mean, var)

    return dict(
        mono_expand=[conv3x3_bn(cv_hypo, mid), conv3x3_bn(cv_hypo, mid)],
        multi_expand=[conv3x3_bn(cv_hypo, mid), conv3x3_bn(cv_hypo, mid)],
        q=conv1x1(mid, kq),
        k=conv1x1(mid, kq),
        v=conv1x1(mid, mid),
        multi_reg=conv1x1_bn(cv_hypo, mid),
        # torch inits gamma to 0; nonzero here so the attention path is exercised.
        gamma=jnp.array([0.3], jnp.float32),
    )


def mono_guide_multi_forward(mono_cost_nchw, cost_volume_nchw, P, mid_dim, kq_dim):
    B, C, H, W = cost_volume_nchw.shape
    mono = jnp.transpose(mono_cost_nchw, (0, 2, 3, 1))   # NHWC
    cv = jnp.transpose(cost_volume_nchw, (0, 2, 3, 1))   # NHWC

    # ---- both expand branches fused: one conv-GEMM kernel per layer ---------
    x = jnp.concatenate([mono, cv], axis=-1)             # channels [mono | multi]
    for (wm, bm), (wu, bu) in zip(P["mono_expand"], P["multi_expand"]):
        wbd, bbd = blockdiag_conv_weights(wm, bm, wu, bu)
        patches, ho, wo = im2col_3x3_s2(x)
        y = gemm_bias(patches, wbd, bbd, relu=True)       # (B*ho*wo, 2*mid)
        x = y.reshape(B, ho, wo, 2 * mid_dim)
    b, h, w, _ = x.shape
    hw = h * w
    feat = x.reshape(b, hw, 2 * mid_dim)                  # [mono_feat | multi_feat]

    # ---- fused q/k/v + attention (single per-batch kernel) ------------------
    zq = jnp.zeros((mid_dim, kq_dim), jnp.float32)
    zv = jnp.zeros((mid_dim, mid_dim), jnp.float32)
    wq_f = jnp.concatenate([P["q"][0], zq], axis=0)       # q/k read the mono rows
    wk_f = jnp.concatenate([P["k"][0], zq], axis=0)
    wv_f = jnp.concatenate([zv, P["v"][0]], axis=0)       # v reads the multi rows
    out_lo = fused_qkv_attention(feat, wq_f, P["q"][1], wk_f, P["k"][1],
                                 wv_f, P["v"][1])         # (b, hw, mid)
    out_lo = out_lo.reshape(b, h, w, mid_dim)

    # ---- fused multi_reg 1x1 + nearest upsample + residual ------------------
    scale = H // h
    fused = fused_epilogue(cv, out_lo, P["multi_reg"][0], P["multi_reg"][1],
                           P["gamma"], scale)
    return jnp.transpose(fused, (0, 3, 1, 2))             # back to NCHW


# --------------------------- pure-JAX reference ------------------------------

def reference_forward(mono_cost_nchw, cost_volume_nchw, P, mid_dim, kq_dim):
    B, C, H, W = cost_volume_nchw.shape
    mono = jnp.transpose(mono_cost_nchw, (0, 2, 3, 1))
    cv = jnp.transpose(cost_volume_nchw, (0, 2, 3, 1))
    hp = jax.lax.Precision.HIGHEST

    def conv3(x, w, b):
        y = jax.lax.conv_general_dilated(
            x, w, (2, 2), ((1, 1), (1, 1)),
            dimension_numbers=("NHWC", "HWIO", "NHWC"), precision=hp)
        return jax.nn.relu(y + b)

    def expand(x, convs):
        for (w, b) in convs:
            x = conv3(x, w, b)
        return x

    mono_feat = expand(mono, P["mono_expand"])
    multi_feat = expand(cv, P["multi_expand"])
    b, h, w, _ = multi_feat.shape
    hw = h * w
    q = (jnp.einsum("bhwc,cd->bhwd", mono_feat, P["q"][0], precision=hp)
         + P["q"][1]).reshape(b, hw, kq_dim)
    k = (jnp.einsum("bhwc,cd->bhwd", mono_feat, P["k"][0], precision=hp)
         + P["k"][1]).reshape(b, hw, kq_dim)
    v = (jnp.einsum("bhwc,cd->bhwd", multi_feat, P["v"][0], precision=hp)
         + P["v"][1]).reshape(b, hw, mid_dim)
    score = jnp.einsum("bik,bjk->bij", q, k, precision=hp)
    atten = jax.nn.softmax(score, axis=-1)
    out = jnp.einsum("bij,bjc->bic", atten, v, precision=hp).reshape(b, h, w, mid_dim)
    idx_h = (jnp.arange(H) * h) // H
    idx_w = (jnp.arange(W) * w) // W
    up = out[:, idx_h][:, :, idx_w]
    residual = jax.nn.relu(
        jnp.einsum("bhwc,cd->bhwd", cv, P["multi_reg"][0], precision=hp) + P["multi_reg"][1])
    fused = residual + P["gamma"][0] * up
    return jnp.transpose(fused, (0, 3, 1, 2))


# --------------------------------- main --------------------------------------

if __name__ == "__main__":
    # Small shapes consistent with the module (cv_hypo_num == mid_dim required).
    CV_HYPO = 8
    MID = 8
    KQ = MID             # mid_dim <= 128  ->  kq_dim = mid_dim
    B, H, W = 2, 16, 16  # input_size width 16 <= 650 -> two-conv expand path

    key = jax.random.PRNGKey(0)
    kp, k1, k2 = jax.random.split(key, 3)
    P = make_params(CV_HYPO, MID, KQ, kp)
    mono_pseudo_cost = jax.random.normal(k1, (B, CV_HYPO, H, W), jnp.float32)
    cost_volume = jax.random.normal(k2, (B, CV_HYPO, H, W), jnp.float32)

    fwd = jax.jit(lambda a, c: mono_guide_multi_forward(a, c, P, MID, KQ))
    out = fwd(mono_pseudo_cost, cost_volume)
    out = jax.block_until_ready(out)
    assert out.shape == (B, MID, H, W)

    ref = reference_forward(mono_pseudo_cost, cost_volume, P, MID, KQ)
    # tolerance slightly above 1e-3 to absorb the EUP approximate reciprocal in
    # the fused softmax (all other paths are f32-accumulated).
    np.testing.assert_allclose(np.asarray(out), np.asarray(ref), atol=2e-3, rtol=2e-3)

    print("KERNEL_OK")
</pallas_src>

<mosaic_0001>
module attributes {stable_mosaic.version = 11 : i64} {
  func.func @_gemm_bias_kernel(%arg0: i32, %arg1: memref<128x256xf32, #tpu.memory_space<vmem>>, %arg2: memref<256x16xf32, #tpu.memory_space<vmem>>, %arg3: memref<1x16xf32, #tpu.memory_space<vmem>>, %arg4: memref<128x16xf32, #tpu.memory_space<vmem>>) attributes {dimension_semantics = [#tpu.dimension_semantics<parallel>], iteration_bounds = array<i64: 1>, scalar_prefetch = 0 : i64, scratch_operands = 0 : i64, tpu.core_type = #tpu.core_type<tc>, window_params = [{transform_indices = @transform_0, window_bounds = array<i64: 128, 256>}, {pipeline_mode = #tpu.pipeline_mode<synchronous>, transform_indices = @transform_1, window_bounds = array<i64: 256, 16>}, {pipeline_mode = #tpu.pipeline_mode<synchronous>, transform_indices = @transform_2, window_bounds = array<i64: 1, 16>}, {transform_indices = @transform_3, window_bounds = array<i64: 128, 16>}]} {
    %c0 = arith.constant 0 : index
    %c0_0 = arith.constant 0 : index
    %0 = vector.load %arg1[%c0, %c0_0] : memref<128x256xf32, #tpu.memory_space<vmem>>, vector<128x256xf32>
    %c0_1 = arith.constant 0 : index
    %c0_2 = arith.constant 0 : index
    %1 = vector.load %arg2[%c0_1, %c0_2] : memref<256x16xf32, #tpu.memory_space<vmem>>, vector<256x16xf32>
    %cst = arith.constant dense<0.000000e+00> : vector<128x16xf32>
    %2 = tpu.matmul %0, %1, %cst {dimension_numbers = #tpu.dot_dimension_numbers<[1], [0], [0], [1], [0, 0, 1, 1], [], []>} : vector<128x256xf32>, vector<256x16xf32>, vector<128x16xf32> -> vector<128x16xf32>
    %c0_3 = arith.constant 0 : index
    %c0_4 = arith.constant 0 : index
    %3 = vector.load %arg3[%c0_3, %c0_4] : memref<1x16xf32, #tpu.memory_space<vmem>>, vector<1x16xf32>
    %4 = vector.broadcast %3 : vector<1x16xf32> to vector<128x16xf32>
    %5 = arith.addf %2, %4 : vector<128x16xf32>
    %cst_5 = arith.constant 0.000000e+00 : f32
    %6 = vector.broadcast %cst_5 : f32 to vector<128x16xf32>
    %7 = arith.maximumf %5, %6 : vector<128x16xf32>
    %c0_6 = arith.constant 0 : index
    %c0_7 = arith.constant 0 : index
    %8 = vector.load %arg4[%c0_6, %c0_7] : memref<128x16xf32, #tpu.memory_space<vmem>>, vector<128x16xf32>
    tpu.vector_store %arg4[%c0_6, %c0_7], %7 {strides = array<i32>} : memref<128x16xf32, #tpu.memory_space<vmem>>, vector<128x16xf32>,
    return
  }
  func.func @transform_0(%arg0: i32) -> (i32, i32) {
    %c0_i32 = arith.constant 0 : i32
    %c0_i32_0 = arith.constant 0 : i32
    return %arg0, %c0_i32 : i32, i32
  }
  func.func @transform_1(%arg0: i32) -> (i32, i32) {
    %c0_i32 = arith.constant 0 : i32
    %c0_i32_0 = arith.constant 0 : i32
    %c0_i32_1 = arith.constant 0 : i32
    return %c0_i32, %c0_i32_0 : i32, i32
  }
  func.func @transform_2(%arg0: i32) -> (i32, i32) {
    %c0_i32 = arith.constant 0 : i32
    %c0_i32_0 = arith.constant 0 : i32
    %c0_i32_1 = arith.constant 0 : i32
    return %c0_i32, %c0_i32_0 : i32, i32
  }
  func.func @transform_3(%arg0: i32) -> (i32, i32) {
    %c0_i32 = arith.constant 0 : i32
    %c0_i32_0 = arith.constant 0 : i32
    return %arg0, %c0_i32 : i32, i32
  }
}

module attributes {stable_mosaic.version = 11 : i64} {
  func.func @_gemm_bias_kernel(%arg0: i32, %arg1: memref<32x256xf32, #tpu.memory_space<vmem>>, %arg2: memref<256x16xf32, #tpu.memory_space<vmem>>, %arg3: memref<1x16xf32, #tpu.memory_space<vmem>>, %arg4: memref<32x16xf32, #tpu.memory_space<vmem>>) attributes {dimension_semantics = [#tpu.dimension_semantics<parallel>], iteration_bounds = array<i64: 1>, scalar_prefetch = 0 : i64, scratch_operands = 0 : i64, tpu.core_type = #tpu.core_type<tc>, window_params = [{transform_indices = @transform_0, window_bounds = array<i64: 32, 256>}, {pipeline_mode = #tpu.pipeline_mode<synchronous>, transform_indices = @transform_1, window_bounds = array<i64: 256, 16>}, {pipeline_mode = #tpu.pipeline_mode<synchronous>, transform_indices = @transform_2, window_bounds = array<i64: 1, 16>}, {transform_indices = @transform_3, window_bounds = array<i64: 32, 16>}]} {
    %c0 = arith.constant 0 : index
    %c0_0 = arith.constant 0 : index
    %0 = vector.load %arg1[%c0, %c0_0] : memref<32x256xf32, #tpu.memory_space<vmem>>, vector<32x256xf32>
    %c0_1 = arith.constant 0 : index
    %c0_2 = arith.constant 0 : index
    %1 = vector.load %arg2[%c0_1, %c0_2] : memref<256x16xf32, #tpu.memory_space<vmem>>, vector<256x16xf32>
    %cst = arith.constant dense<0.000000e+00> : vector<32x16xf32>
    %2 = tpu.matmul %0, %1, %cst {dimension_numbers = #tpu.dot_dimension_numbers<[1], [0], [0], [1], [0, 0, 1, 1], [], []>} : vector<32x256xf32>, vector<256x16xf32>, vector<32x16xf32> -> vector<32x16xf32>
    %c0_3 = arith.constant 0 : index
    %c0_4 = arith.constant 0 : index
    %3 = vector.load %arg3[%c0_3, %c0_4] : memref<1x16xf32, #tpu.memory_space<vmem>>, vector<1x16xf32>
    %4 = vector.broadcast %3 : vector<1x16xf32> to vector<32x16xf32>
    %5 = arith.addf %2, %4 : vector<32x16xf32>
    %cst_5 = arith.constant 0.000000e+00 : f32
    %6 = vector.broadcast %cst_5 : f32 to vector<32x16xf32>
    %7 = arith.maximumf %5, %6 : vector<32x16xf32>
    %c0_6 = arith.constant 0 : index
    %c0_7 = arith.constant 0 : index
    %8 = vector.load %arg4[%c0_6, %c0_7] : memref<32x16xf32, #tpu.memory_space<vmem>>, vector<32x16xf32>
    tpu.vector_store %arg4[%c0_6, %c0_7], %7 {strides = array<i32>} : memref<32x16xf32, #tpu.memory_space<vmem>>, vector<32x16xf32>,
    return
  }
  func.func @transform_0(%arg0: i32) -> (i32, i32) {
    %c0_i32 = arith.constant 0 : i32
    %c0_i32_0 = arith.constant 0 : i32
    return %arg0, %c0_i32 : i32, i32
  }
  func.func @transform_1(%arg0: i32) -> (i32, i32) {
    %c0_i32 = arith.constant 0 : i32
    %c0_i32_0 = arith.constant 0 : i32
    %c0_i32_1 = arith.constant 0 : i32
    return %c0_i32, %c0_i32_0 : i32, i32
  }
  func.func @transform_2(%arg0: i32) -> (i32, i32) {
    %c0_i32 = arith.constant 0 : i32
    %c0_i32_0 = arith.constant 0 : i32
    %c0_i32_1 = arith.constant 0 : i32
    return %c0_i32, %c0_i32_0 : i32, i32
  }
  func.func @transform_3(%arg0: i32) -> (i32, i32) {
    %c0_i32 = arith.constant 0 : i32
    %c0_i32_0 = arith.constant 0 : i32
    return %arg0, %c0_i32 : i32, i32
  }
}

module attributes {stable_mosaic.version = 11 : i64} {
  func.func @_attn_kernel(%arg0: i32, %arg1: memref<1x16x16xf32, #tpu.memory_space<vmem>>, %arg2: memref<16x8xf32, #tpu.memory_space<vmem>>, %arg3: memref<1x8xf32, #tpu.memory_space<vmem>>, %arg4: memref<16x8xf32, #tpu.memory_space<vmem>>, %arg5: memref<1x8xf32, #tpu.memory_space<vmem>>, %arg6: memref<16x8xf32, #tpu.memory_space<vmem>>, %arg7: memref<1x8xf32, #tpu.memory_space<vmem>>, %arg8: memref<1x16x8xf32, #tpu.memory_space<vmem>>) attributes {dimension_semantics = [#tpu.dimension_semantics<parallel>], iteration_bounds = array<i64: 2>, scalar_prefetch = 0 : i64, scratch_operands = 0 : i64, tpu.core_type = #tpu.core_type<tc>, window_params = [{transform_indices = @transform_0, window_bounds = array<i64: 1, 16, 16>}, {pipeline_mode = #tpu.pipeline_mode<synchronous>, transform_indices = @transform_1, window_bounds = array<i64: 16, 8>}, {pipeline_mode = #tpu.pipeline_mode<synchronous>, transform_indices = @transform_2, window_bounds = array<i64: 1, 8>}, {pipeline_mode = #tpu.pipeline_mode<synchronous>, transform_indices = @transform_3, window_bounds = array<i64: 16, 8>}, {pipeline_mode = #tpu.pipeline_mode<synchronous>, transform_indices = @transform_4, window_bounds = array<i64: 1, 8>}, {pipeline_mode = #tpu.pipeline_mode<synchronous>, transform_indices = @transform_5, window_bounds = array<i64: 16, 8>}, {pipeline_mode = #tpu.pipeline_mode<synchronous>, transform_indices = @transform_6, window_bounds = array<i64: 1, 8>}, {transform_indices = @transform_7, window_bounds = array<i64: 1, 16, 8>}]} {
    %c0 = arith.constant 0 : index
    %c0_0 = arith.constant 0 : index
    %c0_1 = arith.constant 0 : index
    %0 = vector.load %arg1[%c0, %c0_0, %c0_1] : memref<1x16x16xf32, #tpu.memory_space<vmem>>, vector<1x16x16xf32>
    %1 = vector.shape_cast %0 : vector<1x16x16xf32> to vector<16x16xf32>
    %c0_2 = arith.constant 0 : index
    %c0_3 = arith.constant 0 : index
    %2 = vector.load %arg2[%c0_2, %c0_3] : memref<16x8xf32, #tpu.memory_space<vmem>>, vector<16x8xf32>
    %cst = arith.constant dense<0.000000e+00> : vector<16x8xf32>
    %3 = tpu.matmul %1, %2, %cst {dimension_numbers = #tpu.dot_dimension_numbers<[1], [0], [0], [1], [0, 0, 1, 1], [], []>} : vector<16x16xf32>, vector<16x8xf32>, vector<16x8xf32> -> vector<16x8xf32>
    %c0_4 = arith.constant 0 : index
    %c0_5 = arith.constant 0 : index
    %4 = vector.load %arg3[%c0_4, %c0_5] : memref<1x8xf32, #tpu.memory_space<vmem>>, vector<1x8xf32>
    %5 = vector.broadcast %4 : vector<1x8xf32> to vector<16x8xf32>
    %6 = arith.addf %3, %5 : vector<16x8xf32>
    %c0_6 = arith.constant 0 : index
    %c0_7 = arith.constant 0 : index
    %7 = vector.load %arg4[%c0_6, %c0_7] : memref<16x8xf32, #tpu.memory_space<vmem>>, vector<16x8xf32>
    %cst_8 = arith.constant dense<0.000000e+00> : vector<16x8xf32>
    %8 = tpu.matmul %1, %7, %cst_8 {dimension_numbers = #tpu.dot_dimension_numbers<[1], [0], [0], [1], [0, 0, 1, 1], [], []>} : vector<16x16xf32>, vector<16x8xf32>, vector<16x8xf32> -> vector<16x8xf32>
    %c0_9 = arith.constant 0 : index
    %c0_10 = arith.constant 0 : index
    %9 = vector.load %arg5[%c0_9, %c0_10] : memref<1x8xf32, #tpu.memory_space<vmem>>, vector<1x8xf32>
    %10 = vector.broadcast %9 : vector<1x8xf32> to vector<16x8xf32>
    %11 = arith.addf %8, %10 : vector<16x8xf32>
    %c0_11 = arith.constant 0 : index
    %c0_12 = arith.constant 0 : index
    %12 = vector.load %arg6[%c0_11, %c0_12] : memref<16x8xf32, #tpu.memory_space<vmem>>, vector<16x8xf32>
    %cst_13 = arith.constant dense<0.000000e+00> : vector<16x8xf32>
    %13 = tpu.matmul %1, %12, %cst_13 {dimension_numbers = #tpu.dot_dimension_numbers<[1], [0], [0], [1], [0, 0, 1, 1], [], []>} : vector<16x16xf32>, vector<16x8xf32>, vector<16x8xf32> -> vector<16x8xf32>
    %c0_14 = arith.constant 0 : index
    %c0_15 = arith.constant 0 : index
    %14 = vector.load %arg7[%c0_14, %c0_15] : memref<1x8xf32, #tpu.memory_space<vmem>>, vector<1x8xf32>
    %15 = vector.broadcast %14 : vector<1x8xf32> to vector<16x8xf32>
    %16 = arith.addf %13, %15 : vector<16x8xf32>
    %cst_16 = arith.constant dense<0.000000e+00> : vector<16x16xf32>
    %17 = tpu.matmul %6, %11, %cst_16 {dimension_numbers = #tpu.dot_dimension_numbers<[1], [1], [0], [0], [0, 0, 1, 0], [], []>} : vector<16x8xf32>, vector<16x8xf32>, vector<16x16xf32> -> vector<16x16xf32>
    %cst_17 = arith.constant dense<0xFF800000> : vector<16xf32>
    %18 = vector.multi_reduction <maximumf>, %17, %cst_17 [1] : vector<16x16xf32> to vector<16xf32>
    %19 = vector.shape_cast %18 : vector<16xf32> to vector<16x1xf32>
    %20 = vector.broadcast %19 : vector<16x1xf32> to vector<16x16xf32>
    %21 = arith.subf %17, %20 : vector<16x16xf32>
    %22 = math.exp %21 : vector<16x16xf32>
    %cst_18 = arith.constant dense<0.000000e+00> : vector<16xf32>
    %23 = vector.multi_reduction <add>, %22, %cst_18 [1] : vector<16x16xf32> to vector<16xf32>
    %24 = vector.shape_cast %23 : vector<16xf32> to vector<16x1xf32>
    %cst_19 = arith.constant dense<0.000000e+00> : vector<16x8xf32>
    %25 = tpu.matmul %22, %16, %cst_19 {dimension_numbers = #tpu.dot_dimension_numbers<[1], [0], [0], [1], [0, 0, 1, 1], [], []>} : vector<16x16xf32>, vector<16x8xf32>, vector<16x8xf32> -> vector<16x8xf32>
    %26 = tpu.reciprocal %24 {approx = true} : vector<16x1xf32> -> vector<16x1xf32>
    %27 = vector.broadcast %26 : vector<16x1xf32> to vector<16x8xf32>
    %28 = arith.mulf %25, %27 : vector<16x8xf32>
    %c0_20 = arith.constant 0 : index
    %c0_21 = arith.constant 0 : index
    %c0_22 = arith.constant 0 : index
    %29 = vector.load %arg8[%c0_20, %c0_21, %c0_22] : memref<1x16x8xf32, #tpu.memory_space<vmem>>, vector<1x16x8xf32>
    %30 = vector.shape_cast %29 : vector<1x16x8xf32> to vector<16x8xf32>
    %31 = vector.shape_cast %28 : vector<16x8xf32> to vector<1x16x8xf32>
    tpu.vector_store %arg8[%c0_20, %c0_21, %c0_22], %31 {strides = array<i32>} : memref<1x16x8xf32, #tpu.memory_space<vmem>>, vector<1x16x8xf32>,
    return
  }
  func.func @transform_0(%arg0: i32) -> (i32, i32, i32) {
    %c0_i32 = arith.constant 0 : i32
    %c0_i32_0 = arith.constant 0 : i32
    %c0_i32_1 = arith.constant 0 : i32
    return %arg0, %c0_i32, %c0_i32_0 : i32, i32, i32
  }
  func.func @transform_1(%arg0: i32) -> (i32, i32) {
    %c0_i32 = arith.constant 0 : i32
    %c0_i32_0 = arith.constant 0 : i32
    %c0_i32_1 = arith.constant 0 : i32
    return %c0_i32, %c0_i32_0 : i32, i32
  }
  func.func @transform_2(%arg0: i32) -> (i32, i32) {
    %c0_i32 = arith.constant 0 : i32
    %c0_i32_0 = arith.constant 0 : i32
    %c0_i32_1 = arith.constant 0 : i32
    return %c0_i32, %c0_i32_0 : i32, i32
  }
  func.func @transform_3(%arg0: i32) -> (i32, i32) {
    %c0_i32 = arith.constant 0 : i32
    %c0_i32_0 = arith.constant 0 : i32
    %c0_i32_1 = arith.constant 0 : i32
    return %c0_i32, %c0_i32_0 : i32, i32
  }
  func.func @transform_4(%arg0: i32) -> (i32, i32) {
    %c0_i32 = arith.constant 0 : i32
    %c0_i32_0 = arith.constant 0 : i32
    %c0_i32_1 = arith.constant 0 : i32
    return %c0_i32, %c0_i32_0 : i32, i32
  }
  func.func @transform_5(%arg0: i32) -> (i32, i32) {
    %c0_i32 = arith.constant 0 : i32
    %c0_i32_0 = arith.constant 0 : i32
    %c0_i32_1 = arith.constant 0 : i32
    return %c0_i32, %c0_i32_0 : i32, i32
  }
  func.func @transform_6(%arg0: i32) -> (i32, i32) {
    %c0_i32 = arith.constant 0 : i32
    %c0_i32_0 = arith.constant 0 : i32
    %c0_i32_1 = arith.constant 0 : i32
    return %c0_i32, %c0_i32_0 : i32, i32
  }
  func.func @transform_7(%arg0: i32) -> (i32, i32, i32) {
    %c0_i32 = arith.constant 0 : i32
    %c0_i32_0 = arith.constant 0 : i32
    %c0_i32_1 = arith.constant 0 : i32
    return %arg0, %c0_i32, %c0_i32_0 : i32, i32, i32
  }
}

module attributes {stable_mosaic.version = 11 : i64} {
  func.func @_epilogue_kernel(%arg0: i32, %arg1: memref<1xf32, #tpu.memory_space<smem>>, %arg2: memref<256x8xf32, #tpu.memory_space<vmem>>, %arg3: memref<64x8xf32, #tpu.memory_space<vmem>>, %arg4: memref<8x8xf32, #tpu.memory_space<vmem>>, %arg5: memref<1x8xf32, #tpu.memory_space<vmem>>, %arg6: memref<256x8xf32, #tpu.memory_space<vmem>>) attributes {dimension_semantics = [#tpu.dimension_semantics<parallel>], iteration_bounds = array<i64: 2>, scalar_prefetch = 0 : i64, scratch_operands = 0 : i64, tpu.core_type = #tpu.core_type<tc>, window_params = [{transform_indices = @transform_0, window_bounds = array<i64: 1>}, {transform_indices = @transform_1, window_bounds = array<i64: 256, 8>}, {transform_indices = @transform_2, window_bounds = array<i64: 64, 8>}, {pipeline_mode = #tpu.pipeline_mode<synchronous>, transform_indices = @transform_3, window_bounds = array<i64: 8, 8>}, {pipeline_mode = #tpu.pipeline_mode<synchronous>, transform_indices = @transform_4, window_bounds = array<i64: 1, 8>}, {transform_indices = @transform_5, window_bounds = array<i64: 256, 8>}]} {
    %c0 = arith.constant 0 : index
    %c0_0 = arith.constant 0 : index
    %0 = vector.load %arg2[%c0, %c0_0] : memref<256x8xf32, #tpu.memory_space<vmem>>, vector<256x8xf32>
    %c0_1 = arith.constant 0 : index
    %c0_2 = arith.constant 0 : index
    %1 = vector.load %arg4[%c0_1, %c0_2] : memref<8x8xf32, #tpu.memory_space<vmem>>, vector<8x8xf32>
    %cst = arith.constant dense<0.000000e+00> : vector<256x8xf32>
    %2 = tpu.matmul %0, %1, %cst {dimension_numbers = #tpu.dot_dimension_numbers<[1], [0], [0], [1], [0, 0, 1, 1], [], []>} : vector<256x8xf32>, vector<8x8xf32>, vector<256x8xf32> -> vector<256x8xf32>
    %c0_3 = arith.constant 0 : index
    %c0_4 = arith.constant 0 : index
    %3 = vector.load %arg5[%c0_3, %c0_4] : memref<1x8xf32, #tpu.memory_space<vmem>>, vector<1x8xf32>
    %4 = vector.broadcast %3 : vector<1x8xf32> to vector<256x8xf32>
    %5 = arith.addf %2, %4 : vector<256x8xf32>
    %cst_5 = arith.constant 0.000000e+00 : f32
    %6 = vector.broadcast %cst_5 : f32 to vector<256x8xf32>
    %7 = arith.maximumf %5, %6 : vector<256x8xf32>
    %c0_6 = arith.constant 0 : index
    %c0_7 = arith.constant 0 : index
    %8 = vector.load %arg3[%c0_6, %c0_7] : memref<64x8xf32, #tpu.memory_space<vmem>>, vector<64x8xf32>
    %9 = vector.shape_cast %8 : vector<64x8xf32> to vector<4x1x16x8xf32>
    %10 = vector.shape_cast %9 : vector<4x1x16x8xf32> to vector<4x1x16x8xf32>
    %11 = vector.broadcast %10 : vector<4x1x16x8xf32> to vector<4x4x16x8xf32>
    %12 = vector.shape_cast %11 : vector<4x4x16x8xf32> to vector<256x8xf32>
    %c0_8 = arith.constant 0 : index
    %13 = memref.load %arg1[%c0_8] : memref<1xf32, #tpu.memory_space<smem>>
    %14 = vector.broadcast %13 : f32 to vector<256x8xf32>
    %15 = arith.mulf %14, %12 : vector<256x8xf32>
    %16 = arith.addf %7, %15 : vector<256x8xf32>
    %c0_9 = arith.constant 0 : index
    %c0_10 = arith.constant 0 : index
    %17 = vector.load %arg6[%c0_9, %c0_10] : memref<256x8xf32, #tpu.memory_space<vmem>>, vector<256x8xf32>
    tpu.vector_store %arg6[%c0_9, %c0_10], %16 {strides = array<i32>} : memref<256x8xf32, #tpu.memory_space<vmem>>, vector<256x8xf32>,
    return
  }
  func.func @transform_0(%arg0: i32) -> i32 {
    %c0_i32 = arith.constant 0 : i32
    %c0_i32_0 = arith.constant 0 : i32
    return %c0_i32 : i32
  }
  func.func @transform_1(%arg0: i32) -> (i32, i32) {
    %c0_i32 = arith.constant 0 : i32
    %c0_i32_0 = arith.constant 0 : i32
    return %arg0, %c0_i32 : i32, i32
  }
  func.func @transform_2(%arg0: i32) -> (i32, i32) {
    %c0_i32 = arith.constant 0 : i32
    %c0_i32_0 = arith.constant 0 : i32
    return %arg0, %c0_i32 : i32, i32
  }
  func.func @transform_3(%arg0: i32) -> (i32, i32) {
    %c0_i32 = arith.constant 0 : i32
    %c0_i32_0 = arith.constant 0 : i32
    %c0_i32_1 = arith.constant 0 : i32
    return %c0_i32, %c0_i32_0 : i32, i32
  }
  func.func @transform_4(%arg0: i32) -> (i32, i32) {
    %c0_i32 = arith.constant 0 : i32
    %c0_i32_0 = arith.constant 0 : i32
    %c0_i32_1 = arith.constant 0 : i32
    return %c0_i32, %c0_i32_0 : i32, i32
  }
  func.func @transform_5(%arg0: i32) -> (i32, i32) {
    %c0_i32 = arith.constant 0 : i32
    %c0_i32_0 = arith.constant 0 : i32
    return %arg0, %c0_i32 : i32, i32
  }
}

</mosaic_0001>

<llo_original>
// kernel: _lambda_.4
$region0: #{_lambda_.4}
  #allocation0 [shape = 'u32[]', space=smem, size = 0x4, offset = 0x4, fixed_abs, tag = 'smem constant byte address 0x4 - core index']
  #allocation1 [shape = 'u32[144,128]{1,0:T(1,128)}', space=vmem, size = 0x12000, scoped, tag = 'internal scratch']
  %s0 = inlined_call_operand.vmem [shape: f32[128,256], index: 0, kind: input, shape index: {}]
  %s1 = inlined_call_operand.vmem [shape: f32[256,16], index: 1, kind: input, shape index: {}]
  %s2 = inlined_call_operand.vmem [shape: f32[1,16], index: 2, kind: input, shape index: {}]
  %s3 = inlined_call_operand.vmem [shape: f32[128,16], index: 3, kind: output, shape index: {}]
  %s4 = sld [smem:[#allocation0]]
  $region22: #{_lambda_.4} parent=0
    _
  %s6 = ssub.s32 1, %s4
  %s7 = scalar_select 0, %s6, %s4
  // Predicated region
  $region2: #{_lambda_.4} parent=0 // pred_check
    _
  $region3: #{_lambda_.4} parent=0 // pred_check_branch
    %9 = sbr.rel (0) target = $region5
  $region4: #{_lambda_.4} parent=0 // pred_region
    _
  $region5: #{_lambda_.4} parent=0 // pred_fallthru
    _
  // Predicated region
  $region6: #{_lambda_.4} parent=0 // pred_check
    _
  $region7: #{_lambda_.4} parent=0 // pred_check_branch
    %11 = sbr.rel (0) target = $region9
  $region8: #{_lambda_.4} parent=0 // pred_region
    _
  $region9: #{_lambda_.4} parent=0 // pred_fallthru
    _
  // Predicated region
  $region10: #{_lambda_.4} parent=0 // pred_check
    _
  $region11: #{_lambda_.4} parent=0 // pred_check_branch
    %13 = sbr.rel (0) target = $region13
  $region12: #{_lambda_.4} parent=0 // pred_region
    _
  $region13: #{_lambda_.4} parent=0 // pred_fallthru
    _
  %v14 = vld [vmem:[%s0] sm:$0xff]
  %v15 = vld [vmem:[%s0 + $0x8] sm:$0xff]
  %v16 = vld [vmem:[%s0 + $0x10] sm:$0xff]
  %v17 = vld [vmem:[%s0 + $0x18] sm:$0xff]
  %v18 = vld [vmem:[%s0 + $0x20] sm:$0xff]
  %v19 = vld [vmem:[%s0 + $0x28] sm:$0xff]
  %v20 = vld [vmem:[%s0 + $0x30] sm:$0xff]
  %v21 = vld [vmem:[%s0 + $0x38] sm:$0xff]
  %v22 = vld [vmem:[%s0 + $0x40] sm:$0xff]
  %v23 = vld [vmem:[%s0 + $0x48] sm:$0xff]
  %v24 = vld [vmem:[%s0 + $0x50] sm:$0xff]
  %v25 = vld [vmem:[%s0 + $0x58] sm:$0xff]
  %v26 = vld [vmem:[%s0 + $0x60] sm:$0xff]
  %v27 = vld [vmem:[%s0 + $0x68] sm:$0xff]
  %v28 = vld [vmem:[%s0 + $0x70] sm:$0xff]
  %v29 = vld [vmem:[%s0 + $0x78] sm:$0xff]
  %v30 = vld [vmem:[%s0 + $0x80] sm:$0xff]
  %v31 = vld [vmem:[%s0 + $0x88] sm:$0xff]
  %v32 = vld [vmem:[%s0 + $0x90] sm:$0xff]
  %v33 = vld [vmem:[%s0 + $0x98] sm:$0xff]
  %v34 = vld [vmem:[%s0 + $0xa0] sm:$0xff]
  %v35 = vld [vmem:[%s0 + $0xa8] sm:$0xff]
  %v36 = vld [vmem:[%s0 + $0xb0] sm:$0xff]
  %v37 = vld [vmem:[%s0 + $0xb8] sm:$0xff]
  %v38 = vld [vmem:[%s0 + $0xc0] sm:$0xff]
  %v39 = vld [vmem:[%s0 + $0xc8] sm:$0xff]
  %v40 = vld [vmem:[%s0 + $0xd0] sm:$0xff]
  %v41 = vld [vmem:[%s0 + $0xd8] sm:$0xff]
  %v42 = vld [vmem:[%s0 + $0xe0] sm:$0xff]
  %v43 = vld [vmem:[%s0 + $0xe8] sm:$0xff]
  %v44 = vld [vmem:[%s0 + $0xf0] sm:$0xff]
  %v45 = vld [vmem:[%s0 + $0xf8] sm:$0xff]
  %v46 = vld [vmem:[%s1] sm:$0xff]
  %v47 = vld [vmem:[%s1 + $0x8] sm:$0xff]
  %v48 = vld [vmem:[%s1 + $0x10] sm:$0xff]
  %v49 = vld [vmem:[%s1 + $0x18] sm:$0xff]
  %v50 = vld [vmem:[%s1 + $0x20] sm:$0xff]
  %v51 = vld [vmem:[%s1 + $0x28] sm:$0xff]
  %v52 = vld [vmem:[%s1 + $0x30] sm:$0xff]
  %v53 = vld [vmem:[%s1 + $0x38] sm:$0xff]
  %v54 = vld [vmem:[%s1 + $0x40] sm:$0xff]
  %v55 = vld [vmem:[%s1 + $0x48] sm:$0xff]
  %v56 = vld [vmem:[%s1 + $0x50] sm:$0xff]
  %v57 = vld [vmem:[%s1 + $0x58] sm:$0xff]
  %v58 = vld [vmem:[%s1 + $0x60] sm:$0xff]
  %v59 = vld [vmem:[%s1 + $0x68] sm:$0xff]
  %v60 = vld [vmem:[%s1 + $0x70] sm:$0xff]
  %v61 = vld [vmem:[%s1 + $0x78] sm:$0xff]
  %v62 = vld [vmem:[%s1 + $0x80] sm:$0xff]
  %v63 = vld [vmem:[%s1 + $0x88] sm:$0xff]
  %v64 = vld [vmem:[%s1 + $0x90] sm:$0xff]
  %v65 = vld [vmem:[%s1 + $0x98] sm:$0xff]
  %v66 = vld [vmem:[%s1 + $0xa0] sm:$0xff]
  %v67 = vld [vmem:[%s1 + $0xa8] sm:$0xff]
  %v68 = vld [vmem:[%s1 + $0xb0] sm:$0xff]
  %v69 = vld [vmem:[%s1 + $0xb8] sm:$0xff]
  %v70 = vld [vmem:[%s1 + $0xc0] sm:$0xff]
  %v71 = vld [vmem:[%s1 + $0xc8] sm:$0xff]
  %v72 = vld [vmem:[%s1 + $0xd0] sm:$0xff]
  %v73 = vld [vmem:[%s1 + $0xd8] sm:$0xff]
  %v74 = vld [vmem:[%s1 + $0xe0] sm:$0xff]
  %v75 = vld [vmem:[%s1 + $0xe8] sm:$0xff]
  %v76 = vld [vmem:[%s1 + $0xf0] sm:$0xff]
  %v77 = vld [vmem:[%s1 + $0xf8] sm:$0xff]
  %v78 = vld [vmem:[%s2] sm:$0x1]
  %v80 = vlaneseq
  %v81 = vshrl.u32 %v80, 7
  %v82 = vsub.s32 0, %v81
  %v83 = vrot.slane %v78, %v82
  %85 = vmatprep.subr.mxu0 0.0
  %86 = vmatpush1.msra.mxu0 %v46
  %87 = vmatprep.subr.mxu0 0.0
  %88 = vmatpush1.msra.mxu0 %v47
  %89 = vmatprep.subr.mxu0 0.0
  %90 = vmatpush1.msra.mxu0 %v48
  %91 = vmatprep.subr.mxu0 0.0
  %92 = vmatpush1.msra.mxu0 %v49
  %93 = vmatprep.subr.mxu0 0.0
  %94 = vmatpush1.msra.mxu0 %v50
  %95 = vmatprep.subr.mxu0 0.0
  %96 = vmatpush1.msra.mxu0 %v51
  %97 = vmatprep.subr.mxu0 0.0
  %98 = vmatpush1.msra.mxu0 %v52
  %99 = vmatprep.subr.mxu0 0.0
  %100 = vmatpush1.msra.mxu0 %v53
  %101 = vmatprep.subr.mxu0 0.0
  %102 = vmatpush1.msra.mxu0 %v54
  %103 = vmatprep.subr.mxu0 0.0
  %104 = vmatpush1.msra.mxu0 %v55
  %105 = vmatprep.subr.mxu0 0.0
  %106 = vmatpush1.msra.mxu0 %v56
  %107 = vmatprep.subr.mxu0 0.0
  %108 = vmatpush1.msra.mxu0 %v57
  %109 = vmatprep.subr.mxu0 0.0
  %110 = vmatpush1.msra.mxu0 %v58
  %111 = vmatprep.subr.mxu0 0.0
  %112 = vmatpush1.msra.mxu0 %v59
  %113 = vmatprep.subr.mxu0 0.0
  %114 = vmatpush1.msra.mxu0 %v60
  %115 = vmatprep.subr.mxu0 0.0
  %116 = vmatpush1.msra.mxu0 %v61
  %117 = vmatprep.subr.mxu0 0.0
  %118 = vmatpush1.msra.mxu0 %v62
  %119 = vmatprep.subr.mxu0 0.0
  %120 = vmatpush1.msra.mxu0 %v63
  %121 = vmatprep.subr.mxu0 0.0
  %122 = vmatpush1.msra.mxu0 %v64
  %123 = vmatprep.subr.mxu0 0.0
  %124 = vmatpush1.msra.mxu0 %v65
  %125 = vmatprep.subr.mxu0 0.0
  %126 = vmatpush1.msra.mxu0 %v66
  %127 = vmatprep.subr.mxu0 0.0
  %128 = vmatpush1.msra.mxu0 %v67
  %129 = vmatprep.subr.mxu0 0.0
  %130 = vmatpush1.msra.mxu0 %v68
  %131 = vmatprep.subr.mxu0 0.0
  %132 = vmatpush1.msra.mxu0 %v69
  %133 = vmatprep.subr.mxu0 0.0
  %134 = vmatpush1.msra.mxu0 %v70
  %135 = vmatprep.subr.mxu0 0.0
  %136 = vmatpush1.msra.mxu0 %v71
  %137 = vmatprep.subr.mxu0 0.0
  %138 = vmatpush1.msra.mxu0 %v72
  %139 = vmatprep.subr.mxu0 0.0
  %140 = vmatpush1.msra.mxu0 %v73
  %141 = vmatprep.subr.mxu0 0.0
  %142 = vmatpush1.msra.mxu0 %v74
  %143 = vmatprep.subr.mxu0 0.0
  %144 = vmatpush1.msra.mxu0 %v75
  %145 = vmatprep.subr.mxu0 0.0
  %146 = vmatpush1.msra.mxu0 %v76
  %147 = vmatprep.subr.mxu0 0.0
  %148 = vmatpush1.msra.mxu0 %v77
  %149 = vmatprep.mubr.f32.mxu0 %v15
  %150 = vmatmul.mubr.f32.gmra.mrb[0].mxu0 %v14
  %v151 = vpop.f32.mrb[0].mxu0
  %v152 = vadd.f32 %v83, %v151
  %v153 = vpop.f32.mrb[0].mxu0
  %154 = vmatprep.mubr.f32.mxu0 %v17
  %155 = vmatmul.mubr.f32.gmra.mrb[0].mxu0 %v16
  %v156 = vpop.f32.mrb[0].mxu0
  %v157 = vadd.f32 %v83, %v156
  %v158 = vpop.f32.mrb[0].mxu0
  %159 = vmatprep.mubr.f32.mxu0 %v19
  %160 = vmatmul.mubr.f32.gmra.mrb[0].mxu0 %v18
  %v161 = vpop.f32.mrb[0].mxu0
  %v162 = vadd.f32 %v83, %v161
  %v163 = vpop.f32.mrb[0].mxu0
  %164 = vmatprep.mubr.f32.mxu0 %v21
  %165 = vmatmul.mubr.f32.gmra.mrb[0].mxu0 %v20
  %v166 = vpop.f32.mrb[0].mxu0
  %v167 = vadd.f32 %v83, %v166
  %v168 = vpop.f32.mrb[0].mxu0
  %169 = vmatprep.mubr.f32.mxu0 %v23
  %170 = vmatmul.mubr.f32.gmra.mrb[0].mxu0 %v22
  %v171 = vpop.f32.mrb[0].mxu0
  %v172 = vadd.f32 %v83, %v171
  %v173 = vpop.f32.mrb[0].mxu0
  %174 = vmatprep.mubr.f32.mxu0 %v25
  %175 = vmatmul.mubr.f32.gmra.mrb[0].mxu0 %v24
  %v176 = vpop.f32.mrb[0].mxu0
  %v177 = vadd.f32 %v83, %v176
  %v178 = vpop.f32.mrb[0].mxu0
  %179 = vmatprep.mubr.f32.mxu0 %v27
  %180 = vmatmul.mubr.f32.gmra.mrb[0].mxu0 %v26
  %v181 = vpop.f32.mrb[0].mxu0
  %v182 = vadd.f32 %v83, %v181
  %v183 = vpop.f32.mrb[0].mxu0
  %184 = vmatprep.mubr.f32.mxu0 %v29
  %185 = vmatmul.mubr.f32.gmra.mrb[0].mxu0 %v28
  %v186 = vpop.f32.mrb[0].mxu0
  %v187 = vadd.f32 %v83, %v186
  %v188 = vpop.f32.mrb[0].mxu0
  %189 = vmatprep.mubr.f32.mxu0 %v31
  %190 = vmatmul.mubr.f32.gmra.mrb[0].mxu0 %v30
  %v191 = vpop.f32.mrb[0].mxu0
  %v192 = vadd.f32 %v83, %v191
  %v193 = vpop.f32.mrb[0].mxu0
  %194 = vmatprep.mubr.f32.mxu0 %v33
  %195 = vmatmul.mubr.f32.gmra.mrb[0].mxu0 %v32
  %v196 = vpop.f32.mrb[0].mxu0
  %v197 = vadd.f32 %v83, %v196
  %v198 = vpop.f32.mrb[0].mxu0
  %199 = vmatprep.mubr.f32.mxu0 %v35
  %200 = vmatmul.mubr.f32.gmra.mrb[0].mxu0 %v34
  %v201 = vpop.f32.mrb[0].mxu0
  %v202 = vadd.f32 %v83, %v201
  %v203 = vpop.f32.mrb[0].mxu0
  %204 = vmatprep.mubr.f32.mxu0 %v37
  %205 = vmatmul.mubr.f32.gmra.mrb[0].mxu0 %v36
  %v206 = vpop.f32.mrb[0].mxu0
  %v207 = vadd.f32 %v83, %v206
  %v208 = vpop.f32.mrb[0].mxu0
  %209 = vmatprep.mubr.f32.mxu0 %v39
  %210 = vmatmul.mubr.f32.gmra.mrb[0].mxu0 %v38
  %v211 = vpop.f32.mrb[0].mxu0
  %v212 = vadd.f32 %v83, %v211
  %v213 = vpop.f32.mrb[0].mxu0
  %214 = vmatprep.mubr.f32.mxu0 %v41
  %215 = vmatmul.mubr.f32.gmra.mrb[0].mxu0 %v40
  %v216 = vpop.f32.mrb[0].mxu0
  %v217 = vadd.f32 %v83, %v216
  %v218 = vpop.f32.mrb[0].mxu0
  %219 = vmatprep.mubr.f32.mxu0 %v43
  %220 = vmatmul.mubr.f32.gmra.mrb[0].mxu0 %v42
  %v221 = vpop.f32.mrb[0].mxu0
  %v222 = vadd.f32 %v83, %v221
  %v223 = vpop.f32.mrb[0].mxu0
  %224 = vmatprep.mubr.f32.mxu0 %v45
  %225 = vmatmul.mubr.f32.gmra.mrb[0].mxu0 %v44
  %v226 = vpop.f32.mrb[0].mxu0
  %v227 = vadd.f32 %v83, %v226
  %v228 = vpop.f32.mrb[0].mxu0
  %229 = vdwg.mxu0
  %v230 = vmax.f32 %v152, 0.0
  %v231 = vmax.f32 %v157, 0.0
  %v232 = vmax.f32 %v162, 0.0
  %v233 = vmax.f32 %v167, 0.0
  %v234 = vmax.f32 %v172, 0.0
  %v235 = vmax.f32 %v177, 0.0
  %v236 = vmax.f32 %v182, 0.0
  %v237 = vmax.f32 %v187, 0.0
  %v238 = vmax.f32 %v192, 0.0
  %v239 = vmax.f32 %v197, 0.0
  %v240 = vmax.f32 %v202, 0.0
  %v241 = vmax.f32 %v207, 0.0
  %v242 = vmax.f32 %v212, 0.0
  %v243 = vmax.f32 %v217, 0.0
  %v244 = vmax.f32 %v222, 0.0
  %v245 = vmax.f32 %v227, 0.0
  %vm246 = vcmask 130048
  %247 = vst.msk [vmem:[%s3] sm:$0xff] %vm246, %v230
  %248 = vst.msk [vmem:[%s3 + $0x8] sm:$0xff] %vm246, %v231
  %249 = vst.msk [vmem:[%s3 + $0x10] sm:$0xff] %vm246, %v232
  %250 = vst.msk [vmem:[%s3 + $0x18] sm:$0xff] %vm246, %v233
  %251 = vst.msk [vmem:[%s3 + $0x20] sm:$0xff] %vm246, %v234
  %252 = vst.msk [vmem:[%s3 + $0x28] sm:$0xff] %vm246, %v235
  %253 = vst.msk [vmem:[%s3 + $0x30] sm:$0xff] %vm246, %v236
  %254 = vst.msk [vmem:[%s3 + $0x38] sm:$0xff] %vm246, %v237
  %255 = vst.msk [vmem:[%s3 + $0x40] sm:$0xff] %vm246, %v238
  %256 = vst.msk [vmem:[%s3 + $0x48] sm:$0xff] %vm246, %v239
  %257 = vst.msk [vmem:[%s3 + $0x50] sm:$0xff] %vm246, %v240
  %258 = vst.msk [vmem:[%s3 + $0x58] sm:$0xff] %vm246, %v241
  %259 = vst.msk [vmem:[%s3 + $0x60] sm:$0xff] %vm246, %v242
  %260 = vst.msk [vmem:[%s3 + $0x68] sm:$0xff] %vm246, %v243
  %261 = vst.msk [vmem:[%s3 + $0x70] sm:$0xff] %vm246, %v244
  %262 = vst.msk [vmem:[%s3 + $0x78] sm:$0xff] %vm246, %v245
  // Predicated region
  $region14: #{_lambda_.4} parent=0 // pred_check
    _
  $region15: #{_lambda_.4} parent=0 // pred_check_branch
    %264 = sbr.rel (0) target = $region17
  $region16: #{_lambda_.4} parent=0 // pred_region
    _
  $region17: #{_lambda_.4} parent=0 // pred_fallthru
    _
  // Predicated region
  $region18: #{_lambda_.4} parent=0 // pred_check
    _
  $region19: #{_lambda_.4} parent=0 // pred_check_branch
    %266 = sbr.rel (0) target = $region21
  $region20: #{_lambda_.4} parent=0 // pred_region
    _
  $region21: #{_lambda_.4} parent=0 // pred_fallthru
    _

// kernel: _lambda_.5
$region0: #{_lambda_.5}
  #allocation0 [shape = 'u32[]', space=smem, size = 0x4, offset = 0x4, fixed_abs, tag = 'smem constant byte address 0x4 - core index']
  #allocation1 [shape = 'u32[144,128]{1,0:T(1,128)}', space=vmem, size = 0x12000, scoped, tag = 'internal scratch']
  %s0 = inlined_call_operand.vmem [shape: f32[32,256], index: 0, kind: input, shape index: {}]
  %s1 = inlined_call_operand.vmem [shape: f32[256,16], index: 1, kind: input, shape index: {}]
  %s2 = inlined_call_operand.vmem [shape: f32[1,16], index: 2, kind: input, shape index: {}]
  %s3 = inlined_call_operand.vmem [shape: f32[32,16], index: 3, kind: output, shape index: {}]
  %s4 = sld [smem:[#allocation0]]
  $region22: #{_lambda_.5} parent=0
    _
  %s6 = ssub.s32 1, %s4
  %s7 = scalar_select 0, %s6, %s4
  // Predicated region
  $region2: #{_lambda_.5} parent=0 // pred_check
    _
  $region3: #{_lambda_.5} parent=0 // pred_check_branch
    %9 = sbr.rel (0) target = $region5
  $region4: #{_lambda_.5} parent=0 // pred_region
    _
  $region5: #{_lambda_.5} parent=0 // pred_fallthru
    _
  // Predicated region
  $region6: #{_lambda_.5} parent=0 // pred_check
    _
  $region7: #{_lambda_.5} parent=0 // pred_check_branch
    %11 = sbr.rel (0) target = $region9
  $region8: #{_lambda_.5} parent=0 // pred_region
    _
  $region9: #{_lambda_.5} parent=0 // pred_fallthru
    _
  // Predicated region
  $region10: #{_lambda_.5} parent=0 // pred_check
    _
  $region11: #{_lambda_.5} parent=0 // pred_check_branch
    %13 = sbr.rel (0) target = $region13
  $region12: #{_lambda_.5} parent=0 // pred_region
    _
  $region13: #{_lambda_.5} parent=0 // pred_fallthru
    _
  %v14 = vld [vmem:[%s0] sm:$0xff]
  %v15 = vld [vmem:[%s0 + $0x8] sm:$0xff]
  %v16 = vld [vmem:[%s0 + $0x10] sm:$0xff]
  %v17 = vld [vmem:[%s0 + $0x18] sm:$0xff]
  %v18 = vld [vmem:[%s0 + $0x20] sm:$0xff]
  %v19 = vld [vmem:[%s0 + $0x28] sm:$0xff]
  %v20 = vld [vmem:[%s0 + $0x30] sm:$0xff]
  %v21 = vld [vmem:[%s0 + $0x38] sm:$0xff]
  %v22 = vld [vmem:[%s1] sm:$0xff]
  %v23 = vld [vmem:[%s1 + $0x8] sm:$0xff]
  %v24 = vld [vmem:[%s1 + $0x10] sm:$0xff]
  %v25 = vld [vmem:[%s1 + $0x18] sm:$0xff]
  %v26 = vld [vmem:[%s1 + $0x20] sm:$0xff]
  %v27 = vld [vmem:[%s1 + $0x28] sm:$0xff]
  %v28 = vld [vmem:[%s1 + $0x30] sm:$0xff]
  %v29 = vld [vmem:[%s1 + $0x38] sm:$0xff]
  %v30 = vld [vmem:[%s1 + $0x40] sm:$0xff]
  %v31 = vld [vmem:[%s1 + $0x48] sm:$0xff]
  %v32 = vld [vmem:[%s1 + $0x50] sm:$0xff]
  %v33 = vld [vmem:[%s1 + $0x58] sm:$0xff]
  %v34 = vld [vmem:[%s1 + $0x60] sm:$0xff]
  %v35 = vld [vmem:[%s1 + $0x68] sm:$0xff]
  %v36 = vld [vmem:[%s1 + $0x70] sm:$0xff]
  %v37 = vld [vmem:[%s1 + $0x78] sm:$0xff]
  %v38 = vld [vmem:[%s1 + $0x80] sm:$0xff]
  %v39 = vld [vmem:[%s1 + $0x88] sm:$0xff]
  %v40 = vld [vmem:[%s1 + $0x90] sm:$0xff]
  %v41 = vld [vmem:[%s1 + $0x98] sm:$0xff]
  %v42 = vld [vmem:[%s1 + $0xa0] sm:$0xff]
  %v43 = vld [vmem:[%s1 + $0xa8] sm:$0xff]
  %v44 = vld [vmem:[%s1 + $0xb0] sm:$0xff]
  %v45 = vld [vmem:[%s1 + $0xb8] sm:$0xff]
  %v46 = vld [vmem:[%s1 + $0xc0] sm:$0xff]
  %v47 = vld [vmem:[%s1 + $0xc8] sm:$0xff]
  %v48 = vld [vmem:[%s1 + $0xd0] sm:$0xff]
  %v49 = vld [vmem:[%s1 + $0xd8] sm:$0xff]
  %v50 = vld [vmem:[%s1 + $0xe0] sm:$0xff]
  %v51 = vld [vmem:[%s1 + $0xe8] sm:$0xff]
  %v52 = vld [vmem:[%s1 + $0xf0] sm:$0xff]
  %v53 = vld [vmem:[%s1 + $0xf8] sm:$0xff]
  %v54 = vld [vmem:[%s2] sm:$0x1]
  %v56 = vlaneseq
  %v57 = vshrl.u32 %v56, 7
  %v58 = vsub.s32 0, %v57
  %v59 = vrot.slane %v54, %v58
  %61 = vmatprep.subr.mxu0 0.0
  %62 = vmatpush1.msra.mxu0 %v22
  %63 = vmatprep.subr.mxu0 0.0
  %64 = vmatpush1.msra.mxu0 %v23
  %65 = vmatprep.subr.mxu0 0.0
  %66 = vmatpush1.msra.mxu0 %v24
  %67 = vmatprep.subr.mxu0 0.0
  %68 = vmatpush1.msra.mxu0 %v25
  %69 = vmatprep.subr.mxu0 0.0
  %70 = vmatpush1.msra.mxu0 %v26
  %71 = vmatprep.subr.mxu0 0.0
  %72 = vmatpush1.msra.mxu0 %v27
  %73 = vmatprep.subr.mxu0 0.0
  %74 = vmatpush1.msra.mxu0 %v28
  %75 = vmatprep.subr.mxu0 0.0
  %76 = vmatpush1.msra.mxu0 %v29
  %77 = vmatprep.subr.mxu0 0.0
  %78 = vmatpush1.msra.mxu0 %v30
  %79 = vmatprep.subr.mxu0 0.0
  %80 = vmatpush1.msra.mxu0 %v31
  %81 = vmatprep.subr.mxu0 0.0
  %82 = vmatpush1.msra.mxu0 %v32
  %83 = vmatprep.subr.mxu0 0.0
  %84 = vmatpush1.msra.mxu0 %v33
  %85 = vmatprep.subr.mxu0 0.0
  %86 = vmatpush1.msra.mxu0 %v34
  %87 = vmatprep.subr.mxu0 0.0
  %88 = vmatpush1.msra.mxu0 %v35
  %89 = vmatprep.subr.mxu0 0.0
  %90 = vmatpush1.msra.mxu0 %v36
  %91 = vmatprep.subr.mxu0 0.0
  %92 = vmatpush1.msra.mxu0 %v37
  %93 = vmatprep.subr.mxu0 0.0
  %94 = vmatpush1.msra.mxu0 %v38
  %95 = vmatprep.subr.mxu0 0.0
  %96 = vmatpush1.msra.mxu0 %v39
  %97 = vmatprep.subr.mxu0 0.0
  %98 = vmatpush1.msra.mxu0 %v40
  %99 = vmatprep.subr.mxu0 0.0
  %100 = vmatpush1.msra.mxu0 %v41
  %101 = vmatprep.subr.mxu0 0.0
  %102 = vmatpush1.msra.mxu0 %v42
  %103 = vmatprep.subr.mxu0 0.0
  %104 = vmatpush1.msra.mxu0 %v43
  %105 = vmatprep.subr.mxu0 0.0
  %106 = vmatpush1.msra.mxu0 %v44
  %107 = vmatprep.subr.mxu0 0.0
  %108 = vmatpush1.msra.mxu0 %v45
  %109 = vmatprep.subr.mxu0 0.0
  %110 = vmatpush1.msra.mxu0 %v46
  %111 = vmatprep.subr.mxu0 0.0
  %112 = vmatpush1.msra.mxu0 %v47
  %113 = vmatprep.subr.mxu0 0.0
  %114 = vmatpush1.msra.mxu0 %v48
  %115 = vmatprep.subr.mxu0 0.0
  %116 = vmatpush1.msra.mxu0 %v49
  %117 = vmatprep.subr.mxu0 0.0
  %118 = vmatpush1.msra.mxu0 %v50
  %119 = vmatprep.subr.mxu0 0.0
  %120 = vmatpush1.msra.mxu0 %v51
  %121 = vmatprep.subr.mxu0 0.0
  %122 = vmatpush1.msra.mxu0 %v52
  %123 = vmatprep.subr.mxu0 0.0
  %124 = vmatpush1.msra.mxu0 %v53
  %125 = vmatprep.mubr.f32.mxu0 %v15
  %126 = vmatmul.mubr.f32.gmra.mrb[0].mxu0 %v14
  %v127 = vpop.f32.mrb[0].mxu0
  %v128 = vadd.f32 %v59, %v127
  %v129 = vpop.f32.mrb[0].mxu0
  %130 = vmatprep.mubr.f32.mxu0 %v17
  %131 = vmatmul.mubr.f32.gmra.mrb[0].mxu0 %v16
  %v132 = vpop.f32.mrb[0].mxu0
  %v133 = vadd.f32 %v59, %v132
  %v134 = vpop.f32.mrb[0].mxu0
  %135 = vmatprep.mubr.f32.mxu0 %v19
  %136 = vmatmul.mubr.f32.gmra.mrb[0].mxu0 %v18
  %v137 = vpop.f32.mrb[0].mxu0
  %v138 = vadd.f32 %v59, %v137
  %v139 = vpop.f32.mrb[0].mxu0
  %140 = vmatprep.mubr.f32.mxu0 %v21
  %141 = vmatmul.mubr.f32.gmra.mrb[0].mxu0 %v20
  %v142 = vpop.f32.mrb[0].mxu0
  %v143 = vadd.f32 %v59, %v142
  %v144 = vpop.f32.mrb[0].mxu0
  %145 = vdwg.mxu0
  %v146 = vmax.f32 %v128, 0.0
  %v147 = vmax.f32 %v133, 0.0
  %v148 = vmax.f32 %v138, 0.0
  %v149 = vmax.f32 %v143, 0.0
  %vm150 = vcmask 130048
  %151 = vst.msk [vmem:[%s3] sm:$0xff] %vm150, %v146
  %152 = vst.msk [vmem:[%s3 + $0x8] sm:$0xff] %vm150, %v147
  %153 = vst.msk [vmem:[%s3 + $0x10] sm:$0xff] %vm150, %v148
  %154 = vst.msk [vmem:[%s3 + $0x18] sm:$0xff] %vm150, %v149
  // Predicated region
  $region14: #{_lambda_.5} parent=0 // pred_check
    _
  $region15: #{_lambda_.5} parent=0 // pred_check_branch
    %156 = sbr.rel (0) target = $region17
  $region16: #{_lambda_.5} parent=0 // pred_region
    _
  $region17: #{_lambda_.5} parent=0 // pred_fallthru
    _
  // Predicated region
  $region18: #{_lambda_.5} parent=0 // pred_check
    _
  $region19: #{_lambda_.5} parent=0 // pred_check_branch
    %158 = sbr.rel (0) target = $region21
  $region20: #{_lambda_.5} parent=0 // pred_region
    _
  $region21: #{_lambda_.5} parent=0 // pred_fallthru
    _

// kernel: _lambda_.6
$region0: #{_lambda_.6}
  #allocation0 [shape = 'u32[]', space=smem, size = 0x4, offset = 0x4, fixed_abs, tag = 'smem constant byte address 0x4 - core index']
  #allocation1 [shape = 'u32[144,128]{1,0:T(1,128)}', space=vmem, size = 0x12000, scoped, tag = 'internal scratch']
  %s0 = inlined_call_operand.vmem [shape: f32[2,16,16], index: 0, kind: input, shape index: {}]
  %s1 = inlined_call_operand.vmem [shape: f32[16,8], index: 1, kind: input, shape index: {}]
  %s2 = inlined_call_operand.vmem [shape: f32[1,8], index: 2, kind: input, shape index: {}]
  %s3 = inlined_call_operand.vmem [shape: f32[16,8], index: 3, kind: input, shape index: {}]
  %s4 = inlined_call_operand.vmem [shape: f32[1,8], index: 4, kind: input, shape index: {}]
  %s5 = inlined_call_operand.vmem [shape: f32[16,8], index: 5, kind: input, shape index: {}]
  %s6 = inlined_call_operand.vmem [shape: f32[1,8], index: 6, kind: input, shape index: {}]
  %s7 = inlined_call_operand.vmem [shape: f32[2,16,8], index: 7, kind: output, shape index: {}]
  %s8 = sld [smem:[#allocation0]]
  $region61: #{_lambda_.6} parent=0
    _
  %s10 = ssub.s32 1, %s8
  %s11 = scalar_select 0, %s10, %s8
  loop: start=0, step=1, limit=4
  $region2: #{_lambda_.6} parent=0 // loop_pre_header
    _
  $region3: #{_lambda_.6} parent=0 // loop_header
    %s13 = sphi 0, %s17
    %p14 = scmp.ge.s32.totalorder %s13, 4
    %s23 = sphi 0, %s25
    %s26 = sphi 0, %s23
    %s27 = sphi 0, %s26
    %s43 = sphi 0, %s27
    %s47 = sphi 0, %s47
    %s49 = sphi 0, %s47
    %s50 = sphi 0, %s49
    %s64 = sphi 0, %s50
    %s68 = sphi 0, %s68
    %s70 = sphi 0, %s68
    %s71 = sphi 0, %s70
    %s85 = sphi 0, %s71
    %s89 = sphi 0, %s89
    %s91 = sphi 0, %s89
    %s92 = sphi 0, %s91
    %s106 = sphi 0, %s92
    %s110 = sphi 0, %s110
    %s112 = sphi 0, %s110
    %s113 = sphi 0, %s112
    %s127 = sphi 0, %s113
    %s131 = sphi 0, %s131
    %s133 = sphi 0, %s131
    %s134 = sphi 0, %s133
    %s148 = sphi 0, %s134
    %s152 = sphi 0, %s152
    %s154 = sphi 0, %s152
    %s155 = sphi 0, %s154
    %s169 = sphi 0, %s155
    %s175 = sphi 0, %s177
    %s178 = sphi 0, %s175
    %s179 = sphi 0, %s178
    %s195 = sphi 0, %s179
  $region4: #{_lambda_.6} parent=0 // loop_header_branch
    %16 = sbr.rel (%p14) target = $region8
  $region5: #{_lambda_.6} parent=0 // loop_body
    %s18 = ssub.s32 %s13, 1
    %s19 = ssub.s32 %s13, 2
    %s20 = sadd.s32 %s13, 1
    %s21 = ssub.s32 %s13, %s20
    %p22 = scmp.eq.s32.totalorder %s21, 0
    %s24 = sadd.s32 %s23, 1
    %s25 = scalar_select %p22, %s23, %s24
    %p28 = pneg %p22
    %p29 = scmp.eq.s32.totalorder %s13, 1
    %p30 = por %p28, %p29
    %p31 = scmp.ne.s32.totalorder %s23, %s26
    %p32 = scmp.eq.s32.totalorder %s13, 0
    %p33 = por %p31, %p32
    %p34 = scmp.ne.s32.totalorder %s23, %s26
    %p35 = scmp.eq.s32.totalorder %s18, 1
    %p36 = por %p34, %p35
    %p37 = scmp.ne.s32.totalorder %s26, %s27
    %p38 = scmp.eq.s32.totalorder %s18, 0
    %p39 = por %p37, %p38
    %p40 = scmp.ne.s32.totalorder %s26, %s27
    %p41 = scmp.eq.s32.totalorder %s19, 1
    %p42 = por %p40, %p41
    %p44 = scmp.ne.s32.totalorder %s27, %s43
    %p45 = scmp.eq.s32.totalorder %s19, 0
    %p46 = por %p44, %p45
    %s48 = sadd.s32 %s47, 1
    %p51 = scmp.eq.s32.totalorder %s13, 1
    %p52 = scmp.ne.s32.totalorder %s47, %s49
    %p53 = scmp.eq.s32.totalorder %s13, 0
    %p54 = por %p52, %p53
    %p55 = scmp.ne.s32.totalorder %s47, %s49
    %p56 = scmp.eq.s32.totalorder %s18, 1
    %p57 = por %p55, %p56
    %p58 = scmp.ne.s32.totalorder %s49, %s50
    %p59 = scmp.eq.s32.totalorder %s18, 0
    %p60 = por %p58, %p59
    %p61 = scmp.ne.s32.totalorder %s49, %s50
    %p62 = scmp.eq.s32.totalorder %s19, 1
    %p63 = por %p61, %p62
    %p65 = scmp.ne.s32.totalorder %s50, %s64
    %p66 = scmp.eq.s32.totalorder %s19, 0
    %p67 = por %p65, %p66
    %s69 = sadd.s32 %s68, 1
    %p72 = scmp.eq.s32.totalorder %s13, 1
    %p73 = scmp.ne.s32.totalorder %s68, %s70
    %p74 = scmp.eq.s32.totalorder %s13, 0
    %p75 = por %p73, %p74
    %p76 = scmp.ne.s32.totalorder %s68, %s70
    %p77 = scmp.eq.s32.totalorder %s18, 1
    %p78 = por %p76, %p77
    %p79 = scmp.ne.s32.totalorder %s70, %s71
    %p80 = scmp.eq.s32.totalorder %s18, 0
    %p81 = por %p79, %p80
    %p82 = scmp.ne.s32.totalorder %s70, %s71
    %p83 = scmp.eq.s32.totalorder %s19, 1
    %p84 = por %p82, %p83
    %p86 = scmp.ne.s32.totalorder %s71, %s85
    %p87 = scmp.eq.s32.totalorder %s19, 0
    %p88 = por %p86, %p87
    %s90 = sadd.s32 %s89, 1
    %p93 = scmp.eq.s32.totalorder %s13, 1
    %p94 = scmp.ne.s32.totalorder %s89, %s91
    %p95 = scmp.eq.s32.totalorder %s13, 0
    %p96 = por %p94, %p95
    %p97 = scmp.ne.s32.totalorder %s89, %s91
    %p98 = scmp.eq.s32.totalorder %s18, 1
    %p99 = por %p97, %p98
    %p100 = scmp.ne.s32.totalorder %s91, %s92
    %p101 = scmp.eq.s32.totalorder %s18, 0
    %p102 = por %p100, %p101
    %p103 = scmp.ne.s32.totalorder %s91, %s92
    %p104 = scmp.eq.s32.totalorder %s19, 1
    %p105 = por %p103, %p104
    %p107 = scmp.ne.s32.totalorder %s92, %s106
    %p108 = scmp.eq.s32.totalorder %s19, 0
    %p109 = por %p107, %p108
    %s111 = sadd.s32 %s110, 1
    %p114 = scmp.eq.s32.totalorder %s13, 1
    %p115 = scmp.ne.s32.totalorder %s110, %s112
    %p116 = scmp.eq.s32.totalorder %s13, 0
    %p117 = por %p115, %p116
    %p118 = scmp.ne.s32.totalorder %s110, %s112
    %p119 = scmp.eq.s32.totalorder %s18, 1
    %p120 = por %p118, %p119
    %p121 = scmp.ne.s32.totalorder %s112, %s113
    %p122 = scmp.eq.s32.totalorder %s18, 0
    %p123 = por %p121, %p122
    %p124 = scmp.ne.s32.totalorder %s112, %s113
    %p125 = scmp.eq.s32.totalorder %s19, 1
    %p126 = por %p124, %p125
    %p128 = scmp.ne.s32.totalorder %s113, %s127
    %p129 = scmp.eq.s32.totalorder %s19, 0
    %p130 = por %p128, %p129
    %s132 = sadd.s32 %s131, 1
    %p135 = scmp.eq.s32.totalorder %s13, 1
    %p136 = scmp.ne.s32.totalorder %s131, %s133
    %p137 = scmp.eq.s32.totalorder %s13, 0
    %p138 = por %p136, %p137
    %p139 = scmp.ne.s32.totalorder %s131, %s133
    %p140 = scmp.eq.s32.totalorder %s18, 1
    %p141 = por %p139, %p140
    %p142 = scmp.ne.s32.totalorder %s133, %s134
    %p143 = scmp.eq.s32.totalorder %s18, 0
    %p144 = por %p142, %p143
    %p145 = scmp.ne.s32.totalorder %s133, %s134
    %p146 = scmp.eq.s32.totalorder %s19, 1
    %p147 = por %p145, %p146
    %p149 = scmp.ne.s32.totalorder %s134, %s148
    %p150 = scmp.eq.s32.totalorder %s19, 0
    %p151 = por %p149, %p150
    %s153 = sadd.s32 %s152, 1
    %p156 = scmp.eq.s32.totalorder %s13, 1
    %p157 = scmp.ne.s32.totalorder %s152, %s154
    %p158 = scmp.eq.s32.totalorder %s13, 0
    %p159 = por %p157, %p158
    %p160 = scmp.ne.s32.totalorder %s152, %s154
    %p161 = scmp.eq.s32.totalorder %s18, 1
    %p162 = por %p160, %p161
    %p163 = scmp.ne.s32.totalorder %s154, %s155
    %p164 = scmp.eq.s32.totalorder %s18, 0
    %p165 = por %p163, %p164
    %p166 = scmp.ne.s32.totalorder %s154, %s155
    %p167 = scmp.eq.s32.totalorder %s19, 1
    %p168 = por %p166, %p167
    %p170 = scmp.ne.s32.totalorder %s155, %s169
    %p171 = scmp.eq.s32.totalorder %s19, 0
    %p172 = por %p170, %p171
    %s173 = ssub.s32 %s13, %s20
    %p174 = scmp.eq.s32.totalorder %s173, 0
    %s176 = sadd.s32 %s175, 1
    %s177 = scalar_select %p174, %s175, %s176
    %p180 = pneg %p174
    %p181 = scmp.eq.s32.totalorder %s13, 1
    %p182 = por %p180, %p181
    %p183 = scmp.ne.s32.totalorder %s175, %s178
    %p184 = scmp.eq.s32.totalorder %s13, 0
    %p185 = por %p183, %p184
    %p186 = scmp.ne.s32.totalorder %s175, %s178
    %p187 = scmp.eq.s32.totalorder %s18, 1
    %p188 = por %p186, %p187
    %p189 = scmp.ne.s32.totalorder %s178, %s179
    %p190 = scmp.eq.s32.totalorder %s18, 0
    %p191 = por %p189, %p190
    %p192 = scmp.ne.s32.totalorder %s178, %s179
    %p193 = scmp.eq.s32.totalorder %s19, 1
    %p194 = por %p192, %p193
    %p196 = scmp.ne.s32.totalorder %s179, %s195
    %p197 = scmp.eq.s32.totalorder %s19, 0
    %p198 = por %p196, %p197
    %p199 = scmp.le.s32.totalorder 1, %s13
    %p200 = scmp.lt.s32.totalorder %s13, 3
    %p201 = pnand %p199, %p200
    %p202 = pneg %p201
    // Predicated region
    $region9: #{_lambda_.6} parent=5 // pred_check
      _
    $region10: #{_lambda_.6} parent=5 // pred_check_branch
      %204 = sbr.rel (%p201) target = $region12
    $region11: #{_lambda_.6} parent=5 // pred_region
      %s205 = ssub.s32 %s13, 1
      // Predicated region
      $region13: #{_lambda_.6} parent=11 // pred_check
        %p206 = pneg %p60
      $region14: #{_lambda_.6} parent=11 // pred_check_branch
        %208 = sbr.rel (%p206) target = $region16
      $region15: #{_lambda_.6} parent=11 // pred_region
        _
      $region16: #{_lambda_.6} parent=11 // pred_fallthru
        _
      // Predicated region
      $region17: #{_lambda_.6} parent=11 // pred_check
        %p209 = pneg %p81
      $region18: #{_lambda_.6} parent=11 // pred_check_branch
        %211 = sbr.rel (%p209) target = $region20
      $region19: #{_lambda_.6} parent=11 // pred_region
        _
      $region20: #{_lambda_.6} parent=11 // pred_fallthru
        _
      // Predicated region
      $region21: #{_lambda_.6} parent=11 // pred_check
        %p212 = pneg %p102
      $region22: #{_lambda_.6} parent=11 // pred_check_branch
        %214 = sbr.rel (%p212) target = $region24
      $region23: #{_lambda_.6} parent=11 // pred_region
        _
      $region24: #{_lambda_.6} parent=11 // pred_fallthru
        _
      // Predicated region
      $region25: #{_lambda_.6} parent=11 // pred_check
        %p215 = pneg %p123
      $region26: #{_lambda_.6} parent=11 // pred_check_branch
        %217 = sbr.rel (%p215) target = $region28
      $region27: #{_lambda_.6} parent=11 // pred_region
        _
      $region28: #{_lambda_.6} parent=11 // pred_fallthru
        _
      // Predicated region
      $region29: #{_lambda_.6} parent=11 // pred_check
        %p218 = pneg %p144
      $region30: #{_lambda_.6} parent=11 // pred_check_branch
        %220 = sbr.rel (%p218) target = $region32
      $region31: #{_lambda_.6} parent=11 // pred_region
        _
      $region32: #{_lambda_.6} parent=11 // pred_fallthru
        _
      // Predicated region
      $region33: #{_lambda_.6} parent=11 // pred_check
        %p221 = pneg %p165
      $region34: #{_lambda_.6} parent=11 // pred_check_branch
        %223 = sbr.rel (%p221) target = $region36
      $region35: #{_lambda_.6} parent=11 // pred_region
        _
      $region36: #{_lambda_.6} parent=11 // pred_fallthru
        _
    $region12: #{_lambda_.6} parent=5 // pred_fallthru
      _
    %p224 = scmp.lt.s32.totalorder %s13, 2
    // Predicated region
    $region37: #{_lambda_.6} parent=5 // pred_check
      %p225 = pneg %p224
    $region38: #{_lambda_.6} parent=5 // pred_check_branch
      %227 = sbr.rel (%p225) target = $region40
    $region39: #{_lambda_.6} parent=5 // pred_region
      // Predicated region
      $region41: #{_lambda_.6} parent=39 // pred_check
        %p228 = pneg %p33
      $region42: #{_lambda_.6} parent=39 // pred_check_branch
        %230 = sbr.rel (%p228) target = $region44
      $region43: #{_lambda_.6} parent=39 // pred_region
        %p231 = scmp.lt.s32.totalorder %s13, 1
        %s232 = scalar_select %p231, %s13, 1
        %s233 = smul.addr %s232, 2
        %s234 = smul.addr %s233, 8
        %s235 = scalar_lea.vmem %s0, %s234
      $region44: #{_lambda_.6} parent=39 // pred_fallthru
        _
    $region40: #{_lambda_.6} parent=5 // pred_fallthru
      _
    %p236 = scmp.le.s32.totalorder 1, %s13
    %p237 = scmp.lt.s32.totalorder %s13, 3
    %p238 = pnand %p236, %p237
    %p239 = pneg %p238
    // Predicated region
    $region45: #{_lambda_.6} parent=5 // pred_check
      _
    $region46: #{_lambda_.6} parent=5 // pred_check_branch
      %241 = sbr.rel (%p238) target = $region48
    $region47: #{_lambda_.6} parent=5 // pred_region
      %s242 = ssub.s32 %s13, 1
      %p243 = scmp.lt.s32.totalorder %s18, 1
      %s244 = scalar_select %p243, %s18, 1
      %s245 = smul.addr %s244, 2
      %s246 = smul.addr %s245, 8
      %s247 = scalar_lea.vmem %s0, %s246
      %p248 = pneg %p39
      %p249 = pneg %p36
      %p250 = pneg %p60
      %p251 = pneg %p57
      %p252 = pneg %p81
      %p253 = pneg %p78
      %p254 = pneg %p102
      %p255 = pneg %p99
      %p256 = pneg %p123
      %p257 = pneg %p120
      %p258 = pneg %p144
      %p259 = pneg %p141
      %p260 = pneg %p165
      %p261 = pneg %p162
      %p262 = pneg %p191
      %p263 = pneg %p188
      %p264 = scmp.lt.s32.totalorder %s18, 1
      %s265 = scalar_select %p264, %s18, 1
      %s266 = smul.addr %s265, 2
      %s267 = smul.addr %s266, 8
      %s268 = scalar_lea.vmem %s7, %s267
      %p269 = scmp.lt.s32.totalorder %s18, 1
      %s270 = scalar_select %p269, %s18, 1
      %s271 = smul.addr %s270, 2
      %s272 = smul.addr %s271, 8
      %s273 = scalar_lea.vmem %s0, %s272
      %p274 = scmp.lt.s32.totalorder %s18, 1
      %s275 = scalar_select %p274, %s18, 1
      %s276 = smul.addr %s275, 2
      %s277 = smul.addr %s276, 8
      %s278 = scalar_lea.vmem %s7, %s277
      %v279 = vld [vmem:[%s273] sm:$0xff]
      %v280 = vld [vmem:[%s273 + $0x8] sm:$0xff]
      %v281 = vld [vmem:[%s1] sm:$0xff]
      %v282 = vld [vmem:[%s1 + $0x8] sm:$0xff]
      %v283 = vld [vmem:[%s2] sm:$0x1]
      %v285 = vlaneseq
      %v286 = vshrl.u32 %v285, 7
      %v287 = vsub.s32 0, %v286
      %v288 = vrot.slane %v283, %v287
      %vm290 = vcmask 130048
      %v292 = vsel %vm290, %v279, 0
      %v295 = vsel %vm290, %v280, 0
      %297 = vmatprep.subr.mxu0 0.0
      %298 = vmatpush1.msra.mxu0 %v281
      %299 = vmatprep.subr.mxu0 0.0
      %300 = vmatpush1.msra.mxu0 %v282
      %301 = vmatprep.subr.mxu0 0.0
      %302 = vmatpush1.msra.mxu0 0.0
      %303 = vmatprep.subr.mxu0 0.0
      %304 = vmatpush1.msra.mxu0 0.0
      %305 = vmatprep.subr.mxu0 0.0
      %306 = vmatpush1.msra.mxu0 0.0
      %307 = vmatprep.subr.mxu0 0.0
      %308 = vmatpush1.msra.mxu0 0.0
      %309 = vmatprep.subr.mxu0 0.0
      %310 = vmatpush1.msra.mxu0 0.0
      %311 = vmatprep.subr.mxu0 0.0
      %312 = vmatpush1.msra.mxu0 0.0
      %313 = vmatprep.subr.mxu0 0.0
      %314 = vmatpush1.msra.mxu0 0.0
      %315 = vmatprep.subr.mxu0 0.0
      %316 = vmatpush1.msra.mxu0 0.0
      %317 = vmatprep.subr.mxu0 0.0
      %318 = vmatpush1.msra.mxu0 0.0
      %319 = vmatprep.subr.mxu0 0.0
      %320 = vmatpush1.msra.mxu0 0.0
      %321 = vmatprep.subr.mxu0 0.0
      %322 = vmatpush1.msra.mxu0 0.0
      %323 = vmatprep.subr.mxu0 0.0
      %324 = vmatpush1.msra.mxu0 0.0
      %325 = vmatprep.subr.mxu0 0.0
      %326 = vmatpush1.msra.mxu0 0.0
      %327 = vmatprep.subr.mxu0 0.0
      %328 = vmatpush1.msra.mxu0 0.0
      %329 = vmatprep.subr.mxu0 0.0
      %330 = vmatpush1.msra.mxu0 0.0
      %331 = vmatprep.subr.mxu0 0.0
      %332 = vmatpush1.msra.mxu0 0.0
      %333 = vmatprep.subr.mxu0 0.0
      %334 = vmatpush1.msra.mxu0 0.0
      %335 = vmatprep.subr.mxu0 0.0
      %336 = vmatpush1.msra.mxu0 0.0
      %337 = vmatprep.subr.mxu0 0.0
      %338 = vmatpush1.msra.mxu0 0.0
      %339 = vmatprep.subr.mxu0 0.0
      %340 = vmatpush1.msra.mxu0 0.0
      %341 = vmatprep.subr.mxu0 0.0
      %342 = vmatpush1.msra.mxu0 0.0
      %343 = vmatprep.subr.mxu0 0.0
      %344 = vmatpush1.msra.mxu0 0.0
      %345 = vmatprep.subr.mxu0 0.0
      %346 = vmatpush1.msra.mxu0 0.0
      %347 = vmatprep.subr.mxu0 0.0
      %348 = vmatpush1.msra.mxu0 0.0
      %349 = vmatprep.subr.mxu0 0.0
      %350 = vmatpush1.msra.mxu0 0.0
      %351 = vmatprep.subr.mxu0 0.0
      %352 = vmatpush1.msra.mxu0 0.0
      %353 = vmatprep.subr.mxu0 0.0
      %354 = vmatpush1.msra.mxu0 0.0
      %355 = vmatprep.subr.mxu0 0.0
      %356 = vmatpush1.msra.mxu0 0.0
      %357 = vmatprep.subr.mxu0 0.0
      %358 = vmatpush1.msra.mxu0 0.0
      %359 = vmatprep.subr.mxu0 0.0
      %360 = vmatpush1.msra.mxu0 0.0
      %361 = vmatprep.mubr.f32.mxu0 0.0
      %362 = vmatmul.mubr.f32.gmra.mrb[0].mxu0 %v292
      %v363 = vpop.f32.mrb[0].mxu0
      %v364 = vadd.f32 %v288, %v363
      %v365 = vpop.f32.mrb[0].mxu0
      %366 = vmatprep.mubr.f32.mxu0 0.0
      %367 = vmatmul.mubr.f32.gmra.mrb[0].mxu0 %v295
      %v368 = vpop.f32.mrb[0].mxu0
      %v369 = vadd.f32 %v288, %v368
      %v370 = vpop.f32.mrb[0].mxu0
      %371 = vdwg.mxu0
      %v372 = vld [vmem:[%s3] sm:$0xff]
      %v373 = vld [vmem:[%s3 + $0x8] sm:$0xff]
      %v374 = vld [vmem:[%s4] sm:$0x1]
      %v376 = vlaneseq
      %v377 = vshrl.u32 %v376, 7
      %v378 = vsub.s32 0, %v377
      %v379 = vrot.slane %v374, %v378
      %381 = vmatprep.subr.mxu0 0.0
      %382 = vmatpush1.msra.mxu0 %v372
      %383 = vmatprep.subr.mxu0 0.0
      %384 = vmatpush1.msra.mxu0 %v373
      %385 = vmatprep.subr.mxu0 0.0
      %386 = vmatpush1.msra.mxu0 0.0
      %387 = vmatprep.subr.mxu0 0.0
      %388 = vmatpush1.msra.mxu0 0.0
      %389 = vmatprep.subr.mxu0 0.0
      %390 = vmatpush1.msra.mxu0 0.0
      %391 = vmatprep.subr.mxu0 0.0
      %392 = vmatpush1.msra.mxu0 0.0
      %393 = vmatprep.subr.mxu0 0.0
      %394 = vmatpush1.msra.mxu0 0.0
      %395 = vmatprep.subr.mxu0 0.0
      %396 = vmatpush1.msra.mxu0 0.0
      %397 = vmatprep.subr.mxu0 0.0
      %398 = vmatpush1.msra.mxu0 0.0
      %399 = vmatprep.subr.mxu0 0.0
      %400 = vmatpush1.msra.mxu0 0.0
      %401 = vmatprep.subr.mxu0 0.0
      %402 = vmatpush1.msra.mxu0 0.0
      %403 = vmatprep.subr.mxu0 0.0
      %404 = vmatpush1.msra.mxu0 0.0
      %405 = vmatprep.subr.mxu0 0.0
      %406 = vmatpush1.msra.mxu0 0.0
      %407 = vmatprep.subr.mxu0 0.0
      %408 = vmatpush1.msra.mxu0 0.0
      %409 = vmatprep.subr.mxu0 0.0
      %410 = vmatpush1.msra.mxu0 0.0
      %411 = vmatprep.subr.mxu0 0.0
      %412 = vmatpush1.msra.mxu0 0.0
      %413 = vmatprep.subr.mxu0 0.0
      %414 = vmatpush1.msra.mxu0 0.0
      %415 = vmatprep.subr.mxu0 0.0
      %416 = vmatpush1.msra.mxu0 0.0
      %417 = vmatprep.subr.mxu0 0.0
      %418 = vmatpush1.msra.mxu0 0.0
      %419 = vmatprep.subr.mxu0 0.0
      %420 = vmatpush1.msra.mxu0 0.0
      %421 = vmatprep.subr.mxu0 0.0
      %422 = vmatpush1.msra.mxu0 0.0
      %423 = vmatprep.subr.mxu0 0.0
      %424 = vmatpush1.msra.mxu0 0.0
      %425 = vmatprep.subr.mxu0 0.0
      %426 = vmatpush1.msra.mxu0 0.0
      %427 = vmatprep.subr.mxu0 0.0
      %428 = vmatpush1.msra.mxu0 0.0
      %429 = vmatprep.subr.mxu0 0.0
      %430 = vmatpush1.msra.mxu0 0.0
      %431 = vmatprep.subr.mxu0 0.0
      %432 = vmatpush1.msra.mxu0 0.0
      %433 = vmatprep.subr.mxu0 0.0
      %434 = vmatpush1.msra.mxu0 0.0
      %435 = vmatprep.subr.mxu0 0.0
      %436 = vmatpush1.msra.mxu0 0.0
      %437 = vmatprep.subr.mxu0 0.0
      %438 = vmatpush1.msra.mxu0 0.0
      %439 = vmatprep.subr.mxu0 0.0
      %440 = vmatpush1.msra.mxu0 0.0
      %441 = vmatprep.subr.mxu0 0.0
      %442 = vmatpush1.msra.mxu0 0.0
      %443 = vmatprep.subr.mxu0 0.0
      %444 = vmatpush1.msra.mxu0 0.0
      %445 = vmatprep.mubr.f32.mxu0 0.0
      %446 = vmatmul.mubr.f32.gmra.mrb[0].mxu0 %v292
      %v447 = vpop.f32.mrb[0].mxu0
      %v448 = vadd.f32 %v379, %v447
      %v449 = vpop.f32.mrb[0].mxu0
      %450 = vmatprep.mubr.f32.mxu0 0.0
      %451 = vmatmul.mubr.f32.gmra.mrb[0].mxu0 %v295
      %v452 = vpop.f32.mrb[0].mxu0
      %v453 = vadd.f32 %v379, %v452
      %v454 = vpop.f32.mrb[0].mxu0
      %455 = vdwg.mxu0
      %v456 = vld [vmem:[%s5] sm:$0xff]
      %v457 = vld [vmem:[%s5 + $0x8] sm:$0xff]
      %v458 = vld [vmem:[%s6] sm:$0x1]
      %v460 = vlaneseq
      %v461 = vshrl.u32 %v460, 7
      %v462 = vsub.s32 0, %v461
      %v463 = vrot.slane %v458, %v462
      %465 = vmatprep.subr.mxu0 0.0
      %466 = vmatpush1.msra.mxu0 %v456
      %467 = vmatprep.subr.mxu0 0.0
      %468 = vmatpush1.msra.mxu0 %v457
      %469 = vmatprep.subr.mxu0 0.0
      %470 = vmatpush1.msra.mxu0 0.0
      %471 = vmatprep.subr.mxu0 0.0
      %472 = vmatpush1.msra.mxu0 0.0
      %473 = vmatprep.subr.mxu0 0.0
      %474 = vmatpush1.msra.mxu0 0.0
      %475 = vmatprep.subr.mxu0 0.0
      %476 = vmatpush1.msra.mxu0 0.0
      %477 = vmatprep.subr.mxu0 0.0
      %478 = vmatpush1.msra.mxu0 0.0
      %479 = vmatprep.subr.mxu0 0.0
      %480 = vmatpush1.msra.mxu0 0.0
      %481 = vmatprep.subr.mxu0 0.0
      %482 = vmatpush1.msra.mxu0 0.0
      %483 = vmatprep.subr.mxu0 0.0
      %484 = vmatpush1.msra.mxu0 0.0
      %485 = vmatprep.subr.mxu0 0.0
      %486 = vmatpush1.msra.mxu0 0.0
      %487 = vmatprep.subr.mxu0 0.0
      %488 = vmatpush1.msra.mxu0 0.0
      %489 = vmatprep.subr.mxu0 0.0
      %490 = vmatpush1.msra.mxu0 0.0
      %491 = vmatprep.subr.mxu0 0.0
      %492 = vmatpush1.msra.mxu0 0.0
      %493 = vmatprep.subr.mxu0 0.0
      %494 = vmatpush1.msra.mxu0 0.0
      %495 = vmatprep.subr.mxu0 0.0
      %496 = vmatpush1.msra.mxu0 0.0
      %497 = vmatprep.subr.mxu0 0.0
      %498 = vmatpush1.msra.mxu0 0.0
      %499 = vmatprep.subr.mxu0 0.0
      %500 = vmatpush1.msra.mxu0 0.0
      %501 = vmatprep.subr.mxu0 0.0
      %502 = vmatpush1.msra.mxu0 0.0
      %503 = vmatprep.subr.mxu0 0.0
      %504 = vmatpush1.msra.mxu0 0.0
      %505 = vmatprep.subr.mxu0 0.0
      %506 = vmatpush1.msra.mxu0 0.0
      %507 = vmatprep.subr.mxu0 0.0
      %508 = vmatpush1.msra.mxu0 0.0
      %509 = vmatprep.subr.mxu0 0.0
      %510 = vmatpush1.msra.mxu0 0.0
      %511 = vmatprep.subr.mxu0 0.0
      %512 = vmatpush1.msra.mxu0 0.0
      %513 = vmatprep.subr.mxu0 0.0
      %514 = vmatpush1.msra.mxu0 0.0
      %515 = vmatprep.subr.mxu0 0.0
      %516 = vmatpush1.msra.mxu0 0.0
      %517 = vmatprep.subr.mxu0 0.0
      %518 = vmatpush1.msra.mxu0 0.0
      %519 = vmatprep.subr.mxu0 0.0
      %520 = vmatpush1.msra.mxu0 0.0
      %521 = vmatprep.subr.mxu0 0.0
      %522 = vmatpush1.msra.mxu0 0.0
      %523 = vmatprep.subr.mxu0 0.0
      %524 = vmatpush1.msra.mxu0 0.0
      %525 = vmatprep.subr.mxu0 0.0
      %526 = vmatpush1.msra.mxu0 0.0
      %527 = vmatprep.subr.mxu0 0.0
      %528 = vmatpush1.msra.mxu0 0.0
      %529 = vmatprep.mubr.f32.mxu0 0.0
      %530 = vmatmul.mubr.f32.gmra.mrb[0].mxu0 %v292
      %v531 = vpop.f32.mrb[0].mxu0
      %v532 = vadd.f32 %v463, %v531
      %v533 = vpop.f32.mrb[0].mxu0
      %534 = vmatprep.mubr.f32.mxu0 0.0
      %535 = vmatmul.mubr.f32.gmra.mrb[0].mxu0 %v295
      %v536 = vpop.f32.mrb[0].mxu0
      %v537 = vadd.f32 %v463, %v536
      %v538 = vpop.f32.mrb[0].mxu0
      %539 = vdwg.mxu0
      %vm540 = vcmask 64512
      %v542 = vsel %vm540, %v364, 0
      %v545 = vsel %vm540, %v369, 0
      %v548 = vsel %vm540, %v448, 0
      %v551 = vsel %vm540, %v453, 0
      %553 = vmatprep.subr.mxu0 0.0
      %554 = vmatpush1.xpose.msra.mxu0 %v548
      %555 = vmatprep.subr.mxu0 0.0
      %556 = vmatpush1.xpose.msra.mxu0 %v551
      %557 = vmatprep.subr.mxu0 0.0
      %558 = vmatpush1.xpose.msra.mxu0 0.0
      %559 = vmatprep.subr.mxu0 0.0
      %560 = vmatpush1.xpose.msra.mxu0 0.0
      %561 = vmatprep.subr.mxu0 0.0
      %562 = vmatpush1.xpose.msra.mxu0 0.0
      %563 = vmatprep.subr.mxu0 0.0
      %564 = vmatpush1.xpose.msra.mxu0 0.0
      %565 = vmatprep.subr.mxu0 0.0
      %566 = vmatpush1.xpose.msra.mxu0 0.0
      %567 = vmatprep.subr.mxu0 0.0
      %568 = vmatpush1.xpose.msra.mxu0 0.0
      %569 = vmatprep.subr.mxu0 0.0
      %570 = vmatpush1.xpose.msra.mxu0 0.0
      %571 = vmatprep.subr.mxu0 0.0
      %572 = vmatpush1.xpose.msra.mxu0 0.0
      %573 = vmatprep.subr.mxu0 0.0
      %574 = vmatpush1.xpose.msra.mxu0 0.0
      %575 = vmatprep.subr.mxu0 0.0
      %576 = vmatpush1.xpose.msra.mxu0 0.0
      %577 = vmatprep.subr.mxu0 0.0
      %578 = vmatpush1.xpose.msra.mxu0 0.0
      %579 = vmatprep.subr.mxu0 0.0
      %580 = vmatpush1.xpose.msra.mxu0 0.0
      %581 = vmatprep.subr.mxu0 0.0
      %582 = vmatpush1.xpose.msra.mxu0 0.0
      %583 = vmatprep.subr.mxu0 0.0
      %584 = vmatpush1.xpose.msra.mxu0 0.0
      %585 = vmatprep.subr.mxu0 0.0
      %586 = vmatpush1.xpose.msra.mxu0 0.0
      %587 = vmatprep.subr.mxu0 0.0
      %588 = vmatpush1.xpose.msra.mxu0 0.0
      %589 = vmatprep.subr.mxu0 0.0
      %590 = vmatpush1.xpose.msra.mxu0 0.0
      %591 = vmatprep.subr.mxu0 0.0
      %592 = vmatpush1.xpose.msra.mxu0 0.0
      %593 = vmatprep.subr.mxu0 0.0
      %594 = vmatpush1.xpose.msra.mxu0 0.0
      %595 = vmatprep.subr.mxu0 0.0
      %596 = vmatpush1.xpose.msra.mxu0 0.0
      %597 = vmatprep.subr.mxu0 0.0
      %598 = vmatpush1.xpose.msra.mxu0 0.0
      %599 = vmatprep.subr.mxu0 0.0
      %600 = vmatpush1.xpose.msra.mxu0 0.0
      %601 = vmatprep.subr.mxu0 0.0
      %602 = vmatpush1.xpose.msra.mxu0 0.0
      %603 = vmatprep.subr.mxu0 0.0
      %604 = vmatpush1.xpose.msra.mxu0 0.0
      %605 = vmatprep.subr.mxu0 0.0
      %606 = vmatpush1.xpose.msra.mxu0 0.0
      %607 = vmatprep.subr.mxu0 0.0
      %608 = vmatpush1.xpose.msra.mxu0 0.0
      %609 = vmatprep.subr.mxu0 0.0
      %610 = vmatpush1.xpose.msra.mxu0 0.0
      %611 = vmatprep.subr.mxu0 0.0
      %612 = vmatpush1.xpose.msra.mxu0 0.0
      %613 = vmatprep.subr.mxu0 0.0
      %614 = vmatpush1.xpose.msra.mxu0 0.0
      %615 = vmatprep.subr.mxu0 0.0
      %616 = vmatpush1.xpose.msra.mxu0 0.0
      %617 = vmatprep.mubr.f32.mxu0 0.0
      %618 = vmatmul.mubr.f32.gmra.mrb[0].mxu0 %v542
      %v619 = vpop.f32.mrb[0].mxu0
      %v620 = vadd.f32 0.0, %v619
      %v621 = vpop.f32.mrb[0].mxu0
      %622 = vmatprep.mubr.f32.mxu0 0.0
      %623 = vmatmul.mubr.f32.gmra.mrb[0].mxu0 %v545
      %v624 = vpop.f32.mrb[0].mxu0
      %v625 = vadd.f32 0.0, %v624
      %v626 = vpop.f32.mrb[0].mxu0
      %627 = vdwg.mxu0
      %v628 = vsel %vm290, %v620, -inf
      %629 = vmax.xlane.f32.xlu0 %v628
      %v630 = vpop.xlane.xlu0 %629
      %v631 = vsel %vm290, %v625, -inf
      %632 = vmax.xlane.f32.xlu0 %v631
      %v633 = vpop.xlane.xlu0 %632
      %v634 = vsub.f32 %v620, %v630
      %v635 = vsub.f32 %v625, %v633
      %v636 = vmul.f32 %v634, 1.442695
      %v637 = vpow.pop %v636
      %v638 = vmul.f32 %v635, 1.442695
      %v639 = vpow.pop %v638
      %v640 = vsel %vm290, %v637, 0.0
      %641 = vadd.xlane.f32.xlu0 %v640
      %v642 = vpop.xlane.xlu0 %641
      %v643 = vsel %vm290, %v639, 0.0
      %644 = vadd.xlane.f32.xlu0 %v643
      %v645 = vpop.xlane.xlu0 %644
      %v647 = vsel %vm290, %v637, 0
      %v650 = vsel %vm290, %v639, 0
      %652 = vmatprep.subr.mxu0 0.0
      %653 = vmatpush1.msra.mxu0 %v532
      %654 = vmatprep.subr.mxu0 0.0
      %655 = vmatpush1.msra.mxu0 %v537
      %656 = vmatprep.subr.mxu0 0.0
      %657 = vmatpush1.msra.mxu0 0.0
      %658 = vmatprep.subr.mxu0 0.0
      %659 = vmatpush1.msra.mxu0 0.0
      %660 = vmatprep.subr.mxu0 0.0
      %661 = vmatpush1.msra.mxu0 0.0
      %662 = vmatprep.subr.mxu0 0.0
      %663 = vmatpush1.msra.mxu0 0.0
      %664 = vmatprep.subr.mxu0 0.0
      %665 = vmatpush1.msra.mxu0 0.0
      %666 = vmatprep.subr.mxu0 0.0
      %667 = vmatpush1.msra.mxu0 0.0
      %668 = vmatprep.subr.mxu0 0.0
      %669 = vmatpush1.msra.mxu0 0.0
      %670 = vmatprep.subr.mxu0 0.0
      %671 = vmatpush1.msra.mxu0 0.0
      %672 = vmatprep.subr.mxu0 0.0
      %673 = vmatpush1.msra.mxu0 0.0
      %674 = vmatprep.subr.mxu0 0.0
      %675 = vmatpush1.msra.mxu0 0.0
      %676 = vmatprep.subr.mxu0 0.0
      %677 = vmatpush1.msra.mxu0 0.0
      %678 = vmatprep.subr.mxu0 0.0
      %679 = vmatpush1.msra.mxu0 0.0
      %680 = vmatprep.subr.mxu0 0.0
      %681 = vmatpush1.msra.mxu0 0.0
      %682 = vmatprep.subr.mxu0 0.0
      %683 = vmatpush1.msra.mxu0 0.0
      %684 = vmatprep.subr.mxu0 0.0
      %685 = vmatpush1.msra.mxu0 0.0
      %686 = vmatprep.subr.mxu0 0.0
      %687 = vmatpush1.msra.mxu0 0.0
      %688 = vmatprep.subr.mxu0 0.0
      %689 = vmatpush1.msra.mxu0 0.0
      %690 = vmatprep.subr.mxu0 0.0
      %691 = vmatpush1.msra.mxu0 0.0
      %692 = vmatprep.subr.mxu0 0.0
      %693 = vmatpush1.msra.mxu0 0.0
      %694 = vmatprep.subr.mxu0 0.0
      %695 = vmatpush1.msra.mxu0 0.0
      %696 = vmatprep.subr.mxu0 0.0
      %697 = vmatpush1.msra.mxu0 0.0
      %698 = vmatprep.subr.mxu0 0.0
      %699 = vmatpush1.msra.mxu0 0.0
      %700 = vmatprep.subr.mxu0 0.0
      %701 = vmatpush1.msra.mxu0 0.0
      %702 = vmatprep.subr.mxu0 0.0
      %703 = vmatpush1.msra.mxu0 0.0
      %704 = vmatprep.subr.mxu0 0.0
      %705 = vmatpush1.msra.mxu0 0.0
      %706 = vmatprep.subr.mxu0 0.0
      %707 = vmatpush1.msra.mxu0 0.0
      %708 = vmatprep.subr.mxu0 0.0
      %709 = vmatpush1.msra.mxu0 0.0
      %710 = vmatprep.subr.mxu0 0.0
      %711 = vmatpush1.msra.mxu0 0.0
      %712 = vmatprep.subr.mxu0 0.0
      %713 = vmatpush1.msra.mxu0 0.0
      %714 = vmatprep.subr.mxu0 0.0
      %715 = vmatpush1.msra.mxu0 0.0
      %716 = vmatprep.mubr.f32.mxu0 0.0
      %717 = vmatmul.mubr.f32.gmra.mrb[0].mxu0 %v647
      %v718 = vpop.f32.mrb[0].mxu0
      %v719 = vadd.f32 0.0, %v718
      %v720 = vpop.f32.mrb[0].mxu0
      %721 = vmatprep.mubr.f32.mxu0 0.0
      %722 = vmatmul.mubr.f32.gmra.mrb[0].mxu0 %v650
      %v723 = vpop.f32.mrb[0].mxu0
      %v724 = vadd.f32 0.0, %v723
      %v725 = vpop.f32.mrb[0].mxu0
      %726 = vdwg.mxu0
      %v727 = vrcp.pop %v642
      %v728 = vrcp.pop %v645
      %v729 = vmul.f32 %v719, %v727
      %v730 = vmul.f32 %v724, %v728
      %731 = vst.msk [vmem:[%s278] sm:$0xff] %vm540, %v729
      %732 = vst.msk [vmem:[%s278 + $0x8] sm:$0xff] %vm540, %v730
      %p733 = scmp.lt.s32.totalorder %s18, 1
      %s734 = scalar_select %p733, %s18, 1
      %s735 = smul.addr %s734, 2
      %s736 = smul.addr %s735, 8
      %s737 = scalar_lea.vmem %s7, %s736
      // Predicated region
      $region49: #{_lambda_.6} parent=47 // pred_check
        %p738 = pneg %p188
      $region50: #{_lambda_.6} parent=47 // pred_check_branch
        %740 = sbr.rel (%p738) target = $region52
      $region51: #{_lambda_.6} parent=47 // pred_region
        _
      $region52: #{_lambda_.6} parent=47 // pred_fallthru
        _
    $region48: #{_lambda_.6} parent=5 // pred_fallthru
      _
    %p741 = scmp.le.s32.totalorder 2, %s13
    // Predicated region
    $region53: #{_lambda_.6} parent=5 // pred_check
      %p742 = pneg %p741
    $region54: #{_lambda_.6} parent=5 // pred_check_branch
      %744 = sbr.rel (%p742) target = $region56
    $region55: #{_lambda_.6} parent=5 // pred_region
      %s745 = ssub.s32 %s13, 2
      // Predicated region
      $region57: #{_lambda_.6} parent=55 // pred_check
        %p746 = pneg %p194
      $region58: #{_lambda_.6} parent=55 // pred_check_branch
        %748 = sbr.rel (%p746) target = $region60
      $region59: #{_lambda_.6} parent=55 // pred_region
        %p749 = scmp.lt.s32.totalorder %s19, 1
        %s750 = scalar_select %p749, %s19, 1
        %s751 = smul.addr %s750, 2
        %s752 = smul.addr %s751, 8
        %s753 = scalar_lea.vmem %s7, %s752
      $region60: #{_lambda_.6} parent=55 // pred_fallthru
        _
    $region56: #{_lambda_.6} parent=5 // pred_fallthru
      _
  $region6: #{_lambda_.6} parent=0 // loop_footer
    %s17 = sadd.s32 1, %s13
  $region7: #{_lambda_.6} parent=0 // loop_footer_branch
    %12 = sbr.rel target = $region3
  $region8: #{_lambda_.6} parent=0 // loop_exit
    _

// kernel: _lambda_.7
$region0: #{_lambda_.7}
  #allocation0 [shape = 'u32[]', space=smem, size = 0x4, offset = 0x4, fixed_abs, tag = 'smem constant byte address 0x4 - core index']
  #allocation1 [shape = 'u32[144,128]{1,0:T(1,128)}', space=vmem, size = 0x12000, scoped, tag = 'internal scratch']
  #allocation2 [shape = 'f32[1]{0:T(128)S(6)}', space=smem, size = 0x200, scoped, tag = 'scoped memory for _lambda_.7']
  %s0 = inlined_call_operand.<no memory space> [shape: f32[1], index: 0, kind: input, shape index: {}]
  %s1 = inlined_call_operand.vmem [shape: f32[512,8], index: 1, kind: input, shape index: {}]
  %s2 = inlined_call_operand.vmem [shape: f32[128,8], index: 2, kind: input, shape index: {}]
  %s3 = inlined_call_operand.vmem [shape: f32[8,8], index: 3, kind: input, shape index: {}]
  %s4 = inlined_call_operand.vmem [shape: f32[1,8], index: 4, kind: input, shape index: {}]
  %s5 = inlined_call_operand.vmem [shape: f32[512,8], index: 5, kind: output, shape index: {}]
  %s6 = sld [smem:[#allocation0]]
  $region53: #{_lambda_.7} parent=0
    _
  %s8 = ssub.s32 1, %s6
  %s9 = scalar_select 0, %s8, %s6
  %10 = sst [smem:[#allocation2]] %s0
  loop: start=0, step=1, limit=4
  $region2: #{_lambda_.7} parent=0 // loop_pre_header
    _
  $region3: #{_lambda_.7} parent=0 // loop_header
    %s12 = sphi 0, %s16
    %p13 = scmp.ge.s32.totalorder %s12, 4
    %s20 = sphi 0, %s20
    %s22 = sphi 0, %s20
    %s23 = sphi 0, %s22
    %s37 = sphi 0, %s23
    %s43 = sphi 0, %s45
    %s46 = sphi 0, %s43
    %s47 = sphi 0, %s46
    %s63 = sphi 0, %s47
    %s69 = sphi 0, %s71
    %s72 = sphi 0, %s69
    %s73 = sphi 0, %s72
    %s89 = sphi 0, %s73
    %s93 = sphi 0, %s93
    %s95 = sphi 0, %s93
    %s96 = sphi 0, %s95
    %s110 = sphi 0, %s96
    %s114 = sphi 0, %s114
    %s116 = sphi 0, %s114
    %s117 = sphi 0, %s116
    %s131 = sphi 0, %s117
    %s137 = sphi 0, %s139
    %s140 = sphi 0, %s137
    %s141 = sphi 0, %s140
    %s157 = sphi 0, %s141
  $region4: #{_lambda_.7} parent=0 // loop_header_branch
    %15 = sbr.rel (%p13) target = $region8
  $region5: #{_lambda_.7} parent=0 // loop_body
    %s17 = ssub.s32 %s12, 1
    %s18 = ssub.s32 %s12, 2
    %s19 = sadd.s32 %s12, 1
    %s21 = sadd.s32 %s20, 1
    %p24 = scmp.eq.s32.totalorder %s12, 1
    %p25 = scmp.ne.s32.totalorder %s20, %s22
    %p26 = scmp.eq.s32.totalorder %s12, 0
    %p27 = por %p25, %p26
    %p28 = scmp.ne.s32.totalorder %s20, %s22
    %p29 = scmp.eq.s32.totalorder %s17, 1
    %p30 = por %p28, %p29
    %p31 = scmp.ne.s32.totalorder %s22, %s23
    %p32 = scmp.eq.s32.totalorder %s17, 0
    %p33 = por %p31, %p32
    %p34 = scmp.ne.s32.totalorder %s22, %s23
    %p35 = scmp.eq.s32.totalorder %s18, 1
    %p36 = por %p34, %p35
    %p38 = scmp.ne.s32.totalorder %s23, %s37
    %p39 = scmp.eq.s32.totalorder %s18, 0
    %p40 = por %p38, %p39
    %s41 = ssub.s32 %s12, %s19
    %p42 = scmp.eq.s32.totalorder %s41, 0
    %s44 = sadd.s32 %s43, 1
    %s45 = scalar_select %p42, %s43, %s44
    %p48 = pneg %p42
    %p49 = scmp.eq.s32.totalorder %s12, 1
    %p50 = por %p48, %p49
    %p51 = scmp.ne.s32.totalorder %s43, %s46
    %p52 = scmp.eq.s32.totalorder %s12, 0
    %p53 = por %p51, %p52
    %p54 = scmp.ne.s32.totalorder %s43, %s46
    %p55 = scmp.eq.s32.totalorder %s17, 1
    %p56 = por %p54, %p55
    %p57 = scmp.ne.s32.totalorder %s46, %s47
    %p58 = scmp.eq.s32.totalorder %s17, 0
    %p59 = por %p57, %p58
    %p60 = scmp.ne.s32.totalorder %s46, %s47
    %p61 = scmp.eq.s32.totalorder %s18, 1
    %p62 = por %p60, %p61
    %p64 = scmp.ne.s32.totalorder %s47, %s63
    %p65 = scmp.eq.s32.totalorder %s18, 0
    %p66 = por %p64, %p65
    %s67 = ssub.s32 %s12, %s19
    %p68 = scmp.eq.s32.totalorder %s67, 0
    %s70 = sadd.s32 %s69, 1
    %s71 = scalar_select %p68, %s69, %s70
    %p74 = pneg %p68
    %p75 = scmp.eq.s32.totalorder %s12, 1
    %p76 = por %p74, %p75
    %p77 = scmp.ne.s32.totalorder %s69, %s72
    %p78 = scmp.eq.s32.totalorder %s12, 0
    %p79 = por %p77, %p78
    %p80 = scmp.ne.s32.totalorder %s69, %s72
    %p81 = scmp.eq.s32.totalorder %s17, 1
    %p82 = por %p80, %p81
    %p83 = scmp.ne.s32.totalorder %s72, %s73
    %p84 = scmp.eq.s32.totalorder %s17, 0
    %p85 = por %p83, %p84
    %p86 = scmp.ne.s32.totalorder %s72, %s73
    %p87 = scmp.eq.s32.totalorder %s18, 1
    %p88 = por %p86, %p87
    %p90 = scmp.ne.s32.totalorder %s73, %s89
    %p91 = scmp.eq.s32.totalorder %s18, 0
    %p92 = por %p90, %p91
    %s94 = sadd.s32 %s93, 1
    %p97 = scmp.eq.s32.totalorder %s12, 1
    %p98 = scmp.ne.s32.totalorder %s93, %s95
    %p99 = scmp.eq.s32.totalorder %s12, 0
    %p100 = por %p98, %p99
    %p101 = scmp.ne.s32.totalorder %s93, %s95
    %p102 = scmp.eq.s32.totalorder %s17, 1
    %p103 = por %p101, %p102
    %p104 = scmp.ne.s32.totalorder %s95, %s96
    %p105 = scmp.eq.s32.totalorder %s17, 0
    %p106 = por %p104, %p105
    %p107 = scmp.ne.s32.totalorder %s95, %s96
    %p108 = scmp.eq.s32.totalorder %s18, 1
    %p109 = por %p107, %p108
    %p111 = scmp.ne.s32.totalorder %s96, %s110
    %p112 = scmp.eq.s32.totalorder %s18, 0
    %p113 = por %p111, %p112
    %s115 = sadd.s32 %s114, 1
    %p118 = scmp.eq.s32.totalorder %s12, 1
    %p119 = scmp.ne.s32.totalorder %s114, %s116
    %p120 = scmp.eq.s32.totalorder %s12, 0
    %p121 = por %p119, %p120
    %p122 = scmp.ne.s32.totalorder %s114, %s116
    %p123 = scmp.eq.s32.totalorder %s17, 1
    %p124 = por %p122, %p123
    %p125 = scmp.ne.s32.totalorder %s116, %s117
    %p126 = scmp.eq.s32.totalorder %s17, 0
    %p127 = por %p125, %p126
    %p128 = scmp.ne.s32.totalorder %s116, %s117
    %p129 = scmp.eq.s32.totalorder %s18, 1
    %p130 = por %p128, %p129
    %p132 = scmp.ne.s32.totalorder %s117, %s131
    %p133 = scmp.eq.s32.totalorder %s18, 0
    %p134 = por %p132, %p133
    %s135 = ssub.s32 %s12, %s19
    %p136 = scmp.eq.s32.totalorder %s135, 0
    %s138 = sadd.s32 %s137, 1
    %s139 = scalar_select %p136, %s137, %s138
    %p142 = pneg %p136
    %p143 = scmp.eq.s32.totalorder %s12, 1
    %p144 = por %p142, %p143
    %p145 = scmp.ne.s32.totalorder %s137, %s140
    %p146 = scmp.eq.s32.totalorder %s12, 0
    %p147 = por %p145, %p146
    %p148 = scmp.ne.s32.totalorder %s137, %s140
    %p149 = scmp.eq.s32.totalorder %s17, 1
    %p150 = por %p148, %p149
    %p151 = scmp.ne.s32.totalorder %s140, %s141
    %p152 = scmp.eq.s32.totalorder %s17, 0
    %p153 = por %p151, %p152
    %p154 = scmp.ne.s32.totalorder %s140, %s141
    %p155 = scmp.eq.s32.totalorder %s18, 1
    %p156 = por %p154, %p155
    %p158 = scmp.ne.s32.totalorder %s141, %s157
    %p159 = scmp.eq.s32.totalorder %s18, 0
    %p160 = por %p158, %p159
    %p161 = scmp.le.s32.totalorder 1, %s12
    %p162 = scmp.lt.s32.totalorder %s12, 3
    %p163 = pnand %p161, %p162
    %p164 = pneg %p163
    // Predicated region
    $region9: #{_lambda_.7} parent=5 // pred_check
      _
    $region10: #{_lambda_.7} parent=5 // pred_check_branch
      %166 = sbr.rel (%p163) target = $region12
    $region11: #{_lambda_.7} parent=5 // pred_region
      %s167 = ssub.s32 %s12, 1
      // Predicated region
      $region13: #{_lambda_.7} parent=11 // pred_check
        %p168 = pneg %p33
      $region14: #{_lambda_.7} parent=11 // pred_check_branch
        %170 = sbr.rel (%p168) target = $region16
      $region15: #{_lambda_.7} parent=11 // pred_region
        _
      $region16: #{_lambda_.7} parent=11 // pred_fallthru
        _
      // Predicated region
      $region17: #{_lambda_.7} parent=11 // pred_check
        %p171 = pneg %p106
      $region18: #{_lambda_.7} parent=11 // pred_check_branch
        %173 = sbr.rel (%p171) target = $region20
      $region19: #{_lambda_.7} parent=11 // pred_region
        _
      $region20: #{_lambda_.7} parent=11 // pred_fallthru
        _
      // Predicated region
      $region21: #{_lambda_.7} parent=11 // pred_check
        %p174 = pneg %p127
      $region22: #{_lambda_.7} parent=11 // pred_check_branch
        %176 = sbr.rel (%p174) target = $region24
      $region23: #{_lambda_.7} parent=11 // pred_region
        _
      $region24: #{_lambda_.7} parent=11 // pred_fallthru
        _
    $region12: #{_lambda_.7} parent=5 // pred_fallthru
      _
    %p177 = scmp.lt.s32.totalorder %s12, 2
    // Predicated region
    $region25: #{_lambda_.7} parent=5 // pred_check
      %p178 = pneg %p177
    $region26: #{_lambda_.7} parent=5 // pred_check_branch
      %180 = sbr.rel (%p178) target = $region28
    $region27: #{_lambda_.7} parent=5 // pred_region
      // Predicated region
      $region29: #{_lambda_.7} parent=27 // pred_check
        %p181 = pneg %p53
      $region30: #{_lambda_.7} parent=27 // pred_check_branch
        %183 = sbr.rel (%p181) target = $region32
      $region31: #{_lambda_.7} parent=27 // pred_region
        %s184 = smul.u32 32, %s12
        %p185 = scmp.lt.s32.totalorder %s184, 63
        %s186 = scalar_select %p185, %s184, 63
        %s187 = smul.addr %s186, 8
        %s188 = scalar_lea.vmem %s1, %s187
        %s189 = smul.u32 32, %s12
      $region32: #{_lambda_.7} parent=27 // pred_fallthru
        _
      // Predicated region
      $region33: #{_lambda_.7} parent=27 // pred_check
        %p190 = pneg %p79
      $region34: #{_lambda_.7} parent=27 // pred_check_branch
        %192 = sbr.rel (%p190) target = $region36
      $region35: #{_lambda_.7} parent=27 // pred_region
        %s193 = smul.u32 8, %s12
        %p194 = scmp.lt.s32.totalorder %s193, 15
        %s195 = scalar_select %p194, %s193, 15
        %s196 = smul.addr %s195, 8
        %s197 = scalar_lea.vmem %s2, %s196
        %s198 = smul.u32 8, %s12
      $region36: #{_lambda_.7} parent=27 // pred_fallthru
        _
    $region28: #{_lambda_.7} parent=5 // pred_fallthru
      _
    %p199 = scmp.le.s32.totalorder 1, %s12
    %p200 = scmp.lt.s32.totalorder %s12, 3
    %p201 = pnand %p199, %p200
    %p202 = pneg %p201
    // Predicated region
    $region37: #{_lambda_.7} parent=5 // pred_check
      _
    $region38: #{_lambda_.7} parent=5 // pred_check_branch
      %204 = sbr.rel (%p201) target = $region40
    $region39: #{_lambda_.7} parent=5 // pred_region
      %s205 = ssub.s32 %s12, 1
      %p206 = pneg %p33
      %p207 = pneg %p30
      %s208 = smul.u32 32, %s17
      %p209 = scmp.lt.s32.totalorder %s208, 63
      %s210 = scalar_select %p209, %s208, 63
      %s211 = smul.addr %s210, 8
      %s212 = scalar_lea.vmem %s1, %s211
      %p213 = pneg %p59
      %p214 = pneg %p56
      %s215 = smul.u32 8, %s17
      %p216 = scmp.lt.s32.totalorder %s215, 15
      %s217 = scalar_select %p216, %s215, 15
      %s218 = smul.addr %s217, 8
      %s219 = scalar_lea.vmem %s2, %s218
      %p220 = pneg %p85
      %p221 = pneg %p82
      %p222 = pneg %p106
      %p223 = pneg %p103
      %p224 = pneg %p127
      %p225 = pneg %p124
      %p226 = pneg %p153
      %p227 = pneg %p150
      %s228 = smul.u32 32, %s17
      %p229 = scmp.lt.s32.totalorder %s228, 63
      %s230 = scalar_select %p229, %s228, 63
      %s231 = smul.addr %s230, 8
      %s232 = scalar_lea.vmem %s5, %s231
      %s233 = smul.u32 32, %s17
      %p234 = scmp.lt.s32.totalorder %s233, 63
      %s235 = scalar_select %p234, %s233, 63
      %s236 = smul.addr %s235, 8
      %s237 = scalar_lea.vmem %s1, %s236
      %s238 = smul.u32 32, %s17
      %s239 = smul.u32 8, %s17
      %p240 = scmp.lt.s32.totalorder %s239, 15
      %s241 = scalar_select %p240, %s239, 15
      %s242 = smul.addr %s241, 8
      %s243 = scalar_lea.vmem %s2, %s242
      %s244 = smul.u32 8, %s17
      %s245 = smul.u32 32, %s17
      %p246 = scmp.lt.s32.totalorder %s245, 63
      %s247 = scalar_select %p246, %s245, 63
      %s248 = smul.addr %s247, 8
      %s249 = scalar_lea.vmem %s5, %s248
      %s250 = smul.u32 32, %s17
      %v251 = vld [vmem:[%s237] sm:$0xff]
      %v252 = vld [vmem:[%s237 + $0x8] sm:$0xff]
      %v253 = vld [vmem:[%s237 + $0x10] sm:$0xff]
      %v254 = vld [vmem:[%s237 + $0x18] sm:$0xff]
      %v255 = vld [vmem:[%s237 + $0x20] sm:$0xff]
      %v256 = vld [vmem:[%s237 + $0x28] sm:$0xff]
      %v257 = vld [vmem:[%s237 + $0x30] sm:$0xff]
      %v258 = vld [vmem:[%s237 + $0x38] sm:$0xff]
      %v259 = vld [vmem:[%s237 + $0x40] sm:$0xff]
      %v260 = vld [vmem:[%s237 + $0x48] sm:$0xff]
      %v261 = vld [vmem:[%s237 + $0x50] sm:$0xff]
      %v262 = vld [vmem:[%s237 + $0x58] sm:$0xff]
      %v263 = vld [vmem:[%s237 + $0x60] sm:$0xff]
      %v264 = vld [vmem:[%s237 + $0x68] sm:$0xff]
      %v265 = vld [vmem:[%s237 + $0x70] sm:$0xff]
      %v266 = vld [vmem:[%s237 + $0x78] sm:$0xff]
      %v267 = vld [vmem:[%s237 + $0x80] sm:$0xff]
      %v268 = vld [vmem:[%s237 + $0x88] sm:$0xff]
      %v269 = vld [vmem:[%s237 + $0x90] sm:$0xff]
      %v270 = vld [vmem:[%s237 + $0x98] sm:$0xff]
      %v271 = vld [vmem:[%s237 + $0xa0] sm:$0xff]
      %v272 = vld [vmem:[%s237 + $0xa8] sm:$0xff]
      %v273 = vld [vmem:[%s237 + $0xb0] sm:$0xff]
      %v274 = vld [vmem:[%s237 + $0xb8] sm:$0xff]
      %v275 = vld [vmem:[%s237 + $0xc0] sm:$0xff]
      %v276 = vld [vmem:[%s237 + $0xc8] sm:$0xff]
      %v277 = vld [vmem:[%s237 + $0xd0] sm:$0xff]
      %v278 = vld [vmem:[%s237 + $0xd8] sm:$0xff]
      %v279 = vld [vmem:[%s237 + $0xe0] sm:$0xff]
      %v280 = vld [vmem:[%s237 + $0xe8] sm:$0xff]
      %v281 = vld [vmem:[%s237 + $0xf0] sm:$0xff]
      %v282 = vld [vmem:[%s237 + $0xf8] sm:$0xff]
      %v283 = vld [vmem:[%s3] sm:$0xff]
      %v284 = vld [vmem:[%s4] sm:$0x1]
      %v286 = vlaneseq
      %v287 = vshrl.u32 %v286, 7
      %v288 = vsub.s32 0, %v287
      %v289 = vrot.slane %v284, %v288
      %vm291 = vcmask 64512
      %v293 = vsel %vm291, %v251, 0
      %v296 = vsel %vm291, %v252, 0
      %v299 = vsel %vm291, %v253, 0
      %v302 = vsel %vm291, %v254, 0
      %v305 = vsel %vm291, %v255, 0
      %v308 = vsel %vm291, %v256, 0
      %v311 = vsel %vm291, %v257, 0
      %v314 = vsel %vm291, %v258, 0
      %v317 = vsel %vm291, %v259, 0
      %v320 = vsel %vm291, %v260, 0
      %v323 = vsel %vm291, %v261, 0
      %v326 = vsel %vm291, %v262, 0
      %v329 = vsel %vm291, %v263, 0
      %v332 = vsel %vm291, %v264, 0
      %v335 = vsel %vm291, %v265, 0
      %v338 = vsel %vm291, %v266, 0
      %v341 = vsel %vm291, %v267, 0
      %v344 = vsel %vm291, %v268, 0
      %v347 = vsel %vm291, %v269, 0
      %v350 = vsel %vm291, %v270, 0
      %v353 = vsel %vm291, %v271, 0
      %v356 = vsel %vm291, %v272, 0
      %v359 = vsel %vm291, %v273, 0
      %v362 = vsel %vm291, %v274, 0
      %v365 = vsel %vm291, %v275, 0
      %v368 = vsel %vm291, %v276, 0
      %v371 = vsel %vm291, %v277, 0
      %v374 = vsel %vm291, %v278, 0
      %v377 = vsel %vm291, %v279, 0
      %v380 = vsel %vm291, %v280, 0
      %v383 = vsel %vm291, %v281, 0
      %v386 = vsel %vm291, %v282, 0
      %388 = vmatprep.subr.mxu0 0.0
      %389 = vmatpush1.msra.mxu0 %v283
      %390 = vmatprep.subr.mxu0 0.0
      %391 = vmatpush1.msra.mxu0 0.0
      %392 = vmatprep.subr.mxu0 0.0
      %393 = vmatpush1.msra.mxu0 0.0
      %394 = vmatprep.subr.mxu0 0.0
      %395 = vmatpush1.msra.mxu0 0.0
      %396 = vmatprep.subr.mxu0 0.0
      %397 = vmatpush1.msra.mxu0 0.0
      %398 = vmatprep.subr.mxu0 0.0
      %399 = vmatpush1.msra.mxu0 0.0
      %400 = vmatprep.subr.mxu0 0.0
      %401 = vmatpush1.msra.mxu0 0.0
      %402 = vmatprep.subr.mxu0 0.0
      %403 = vmatpush1.msra.mxu0 0.0
      %404 = vmatprep.subr.mxu0 0.0
      %405 = vmatpush1.msra.mxu0 0.0
      %406 = vmatprep.subr.mxu0 0.0
      %407 = vmatpush1.msra.mxu0 0.0
      %408 = vmatprep.subr.mxu0 0.0
      %409 = vmatpush1.msra.mxu0 0.0
      %410 = vmatprep.subr.mxu0 0.0
      %411 = vmatpush1.msra.mxu0 0.0
      %412 = vmatprep.subr.mxu0 0.0
      %413 = vmatpush1.msra.mxu0 0.0
      %414 = vmatprep.subr.mxu0 0.0
      %415 = vmatpush1.msra.mxu0 0.0
      %416 = vmatprep.subr.mxu0 0.0
      %417 = vmatpush1.msra.mxu0 0.0
      %418 = vmatprep.subr.mxu0 0.0
      %419 = vmatpush1.msra.mxu0 0.0
      %420 = vmatprep.subr.mxu0 0.0
      %421 = vmatpush1.msra.mxu0 0.0
      %422 = vmatprep.subr.mxu0 0.0
      %423 = vmatpush1.msra.mxu0 0.0
      %424 = vmatprep.subr.mxu0 0.0
      %425 = vmatpush1.msra.mxu0 0.0
      %426 = vmatprep.subr.mxu0 0.0
      %427 = vmatpush1.msra.mxu0 0.0
      %428 = vmatprep.subr.mxu0 0.0
      %429 = vmatpush1.msra.mxu0 0.0
      %430 = vmatprep.subr.mxu0 0.0
      %431 = vmatpush1.msra.mxu0 0.0
      %432 = vmatprep.subr.mxu0 0.0
      %433 = vmatpush1.msra.mxu0 0.0
      %434 = vmatprep.subr.mxu0 0.0
      %435 = vmatpush1.msra.mxu0 0.0
      %436 = vmatprep.subr.mxu0 0.0
      %437 = vmatpush1.msra.mxu0 0.0
      %438 = vmatprep.subr.mxu0 0.0
      %439 = vmatpush1.msra.mxu0 0.0
      %440 = vmatprep.subr.mxu0 0.0
      %441 = vmatpush1.msra.mxu0 0.0
      %442 = vmatprep.subr.mxu0 0.0
      %443 = vmatpush1.msra.mxu0 0.0
      %444 = vmatprep.subr.mxu0 0.0
      %445 = vmatpush1.msra.mxu0 0.0
      %446 = vmatprep.subr.mxu0 0.0
      %447 = vmatpush1.msra.mxu0 0.0
      %448 = vmatprep.subr.mxu0 0.0
      %449 = vmatpush1.msra.mxu0 0.0
      %450 = vmatprep.subr.mxu0 0.0
      %451 = vmatpush1.msra.mxu0 0.0
      %452 = vmatprep.mubr.f32.mxu0 0.0
      %453 = vmatmul.mubr.f32.gmra.mrb[0].mxu0 %v293
      %v454 = vpop.f32.mrb[0].mxu0
      %v455 = vadd.f32 %v289, %v454
      %v456 = vpop.f32.mrb[0].mxu0
      %457 = vmatprep.mubr.f32.mxu0 0.0
      %458 = vmatmul.mubr.f32.gmra.mrb[0].mxu0 %v296
      %v459 = vpop.f32.mrb[0].mxu0
      %v460 = vadd.f32 %v289, %v459
      %v461 = vpop.f32.mrb[0].mxu0
      %462 = vmatprep.mubr.f32.mxu0 0.0
      %463 = vmatmul.mubr.f32.gmra.mrb[0].mxu0 %v299
      %v464 = vpop.f32.mrb[0].mxu0
      %v465 = vadd.f32 %v289, %v464
      %v466 = vpop.f32.mrb[0].mxu0
      %467 = vmatprep.mubr.f32.mxu0 0.0
      %468 = vmatmul.mubr.f32.gmra.mrb[0].mxu0 %v302
      %v469 = vpop.f32.mrb[0].mxu0
      %v470 = vadd.f32 %v289, %v469
      %v471 = vpop.f32.mrb[0].mxu0
      %472 = vmatprep.mubr.f32.mxu0 0.0
      %473 = vmatmul.mubr.f32.gmra.mrb[0].mxu0 %v305
      %v474 = vpop.f32.mrb[0].mxu0
      %v475 = vadd.f32 %v289, %v474
      %v476 = vpop.f32.mrb[0].mxu0
      %477 = vmatprep.mubr.f32.mxu0 0.0
      %478 = vmatmul.mubr.f32.gmra.mrb[0].mxu0 %v308
      %v479 = vpop.f32.mrb[0].mxu0
      %v480 = vadd.f32 %v289, %v479
      %v481 = vpop.f32.mrb[0].mxu0
      %482 = vmatprep.mubr.f32.mxu0 0.0
      %483 = vmatmul.mubr.f32.gmra.mrb[0].mxu0 %v311
      %v484 = vpop.f32.mrb[0].mxu0
      %v485 = vadd.f32 %v289, %v484
      %v486 = vpop.f32.mrb[0].mxu0
      %487 = vmatprep.mubr.f32.mxu0 0.0
      %488 = vmatmul.mubr.f32.gmra.mrb[0].mxu0 %v314
      %v489 = vpop.f32.mrb[0].mxu0
      %v490 = vadd.f32 %v289, %v489
      %v491 = vpop.f32.mrb[0].mxu0
      %492 = vmatprep.mubr.f32.mxu0 0.0
      %493 = vmatmul.mubr.f32.gmra.mrb[0].mxu0 %v317
      %v494 = vpop.f32.mrb[0].mxu0
      %v495 = vadd.f32 %v289, %v494
      %v496 = vpop.f32.mrb[0].mxu0
      %497 = vmatprep.mubr.f32.mxu0 0.0
      %498 = vmatmul.mubr.f32.gmra.mrb[0].mxu0 %v320
      %v499 = vpop.f32.mrb[0].mxu0
      %v500 = vadd.f32 %v289, %v499
      %v501 = vpop.f32.mrb[0].mxu0
      %502 = vmatprep.mubr.f32.mxu0 0.0
      %503 = vmatmul.mubr.f32.gmra.mrb[0].mxu0 %v323
      %v504 = vpop.f32.mrb[0].mxu0
      %v505 = vadd.f32 %v289, %v504
      %v506 = vpop.f32.mrb[0].mxu0
      %507 = vmatprep.mubr.f32.mxu0 0.0
      %508 = vmatmul.mubr.f32.gmra.mrb[0].mxu0 %v326
      %v509 = vpop.f32.mrb[0].mxu0
      %v510 = vadd.f32 %v289, %v509
      %v511 = vpop.f32.mrb[0].mxu0
      %512 = vmatprep.mubr.f32.mxu0 0.0
      %513 = vmatmul.mubr.f32.gmra.mrb[0].mxu0 %v329
      %v514 = vpop.f32.mrb[0].mxu0
      %v515 = vadd.f32 %v289, %v514
      %v516 = vpop.f32.mrb[0].mxu0
      %517 = vmatprep.mubr.f32.mxu0 0.0
      %518 = vmatmul.mubr.f32.gmra.mrb[0].mxu0 %v332
      %v519 = vpop.f32.mrb[0].mxu0
      %v520 = vadd.f32 %v289, %v519
      %v521 = vpop.f32.mrb[0].mxu0
      %522 = vmatprep.mubr.f32.mxu0 0.0
      %523 = vmatmul.mubr.f32.gmra.mrb[0].mxu0 %v335
      %v524 = vpop.f32.mrb[0].mxu0
      %v525 = vadd.f32 %v289, %v524
      %v526 = vpop.f32.mrb[0].mxu0
      %527 = vmatprep.mubr.f32.mxu0 0.0
      %528 = vmatmul.mubr.f32.gmra.mrb[0].mxu0 %v338
      %v529 = vpop.f32.mrb[0].mxu0
      %v530 = vadd.f32 %v289, %v529
      %v531 = vpop.f32.mrb[0].mxu0
      %532 = vmatprep.mubr.f32.mxu0 0.0
      %533 = vmatmul.mubr.f32.gmra.mrb[0].mxu0 %v341
      %v534 = vpop.f32.mrb[0].mxu0
      %v535 = vadd.f32 %v289, %v534
      %v536 = vpop.f32.mrb[0].mxu0
      %537 = vmatprep.mubr.f32.mxu0 0.0
      %538 = vmatmul.mubr.f32.gmra.mrb[0].mxu0 %v344
      %v539 = vpop.f32.mrb[0].mxu0
      %v540 = vadd.f32 %v289, %v539
      %v541 = vpop.f32.mrb[0].mxu0
      %542 = vmatprep.mubr.f32.mxu0 0.0
      %543 = vmatmul.mubr.f32.gmra.mrb[0].mxu0 %v347
      %v544 = vpop.f32.mrb[0].mxu0
      %v545 = vadd.f32 %v289, %v544
      %v546 = vpop.f32.mrb[0].mxu0
      %547 = vmatprep.mubr.f32.mxu0 0.0
      %548 = vmatmul.mubr.f32.gmra.mrb[0].mxu0 %v350
      %v549 = vpop.f32.mrb[0].mxu0
      %v550 = vadd.f32 %v289, %v549
      %v551 = vpop.f32.mrb[0].mxu0
      %552 = vmatprep.mubr.f32.mxu0 0.0
      %553 = vmatmul.mubr.f32.gmra.mrb[0].mxu0 %v353
      %v554 = vpop.f32.mrb[0].mxu0
      %v555 = vadd.f32 %v289, %v554
      %v556 = vpop.f32.mrb[0].mxu0
      %557 = vmatprep.mubr.f32.mxu0 0.0
      %558 = vmatmul.mubr.f32.gmra.mrb[0].mxu0 %v356
      %v559 = vpop.f32.mrb[0].mxu0
      %v560 = vadd.f32 %v289, %v559
      %v561 = vpop.f32.mrb[0].mxu0
      %562 = vmatprep.mubr.f32.mxu0 0.0
      %563 = vmatmul.mubr.f32.gmra.mrb[0].mxu0 %v359
      %v564 = vpop.f32.mrb[0].mxu0
      %v565 = vadd.f32 %v289, %v564
      %v566 = vpop.f32.mrb[0].mxu0
      %567 = vmatprep.mubr.f32.mxu0 0.0
      %568 = vmatmul.mubr.f32.gmra.mrb[0].mxu0 %v362
      %v569 = vpop.f32.mrb[0].mxu0
      %v570 = vadd.f32 %v289, %v569
      %v571 = vpop.f32.mrb[0].mxu0
      %572 = vmatprep.mubr.f32.mxu0 0.0
      %573 = vmatmul.mubr.f32.gmra.mrb[0].mxu0 %v365
      %v574 = vpop.f32.mrb[0].mxu0
      %v575 = vadd.f32 %v289, %v574
      %v576 = vpop.f32.mrb[0].mxu0
      %577 = vmatprep.mubr.f32.mxu0 0.0
      %578 = vmatmul.mubr.f32.gmra.mrb[0].mxu0 %v368
      %v579 = vpop.f32.mrb[0].mxu0
      %v580 = vadd.f32 %v289, %v579
      %v581 = vpop.f32.mrb[0].mxu0
      %582 = vmatprep.mubr.f32.mxu0 0.0
      %583 = vmatmul.mubr.f32.gmra.mrb[0].mxu0 %v371
      %v584 = vpop.f32.mrb[0].mxu0
      %v585 = vadd.f32 %v289, %v584
      %v586 = vpop.f32.mrb[0].mxu0
      %587 = vmatprep.mubr.f32.mxu0 0.0
      %588 = vmatmul.mubr.f32.gmra.mrb[0].mxu0 %v374
      %v589 = vpop.f32.mrb[0].mxu0
      %v590 = vadd.f32 %v289, %v589
      %v591 = vpop.f32.mrb[0].mxu0
      %592 = vmatprep.mubr.f32.mxu0 0.0
      %593 = vmatmul.mubr.f32.gmra.mrb[0].mxu0 %v377
      %v594 = vpop.f32.mrb[0].mxu0
      %v595 = vadd.f32 %v289, %v594
      %v596 = vpop.f32.mrb[0].mxu0
      %597 = vmatprep.mubr.f32.mxu0 0.0
      %598 = vmatmul.mubr.f32.gmra.mrb[0].mxu0 %v380
      %v599 = vpop.f32.mrb[0].mxu0
      %v600 = vadd.f32 %v289, %v599
      %v601 = vpop.f32.mrb[0].mxu0
      %602 = vmatprep.mubr.f32.mxu0 0.0
      %603 = vmatmul.mubr.f32.gmra.mrb[0].mxu0 %v383
      %v604 = vpop.f32.mrb[0].mxu0
      %v605 = vadd.f32 %v289, %v604
      %v606 = vpop.f32.mrb[0].mxu0
      %607 = vmatprep.mubr.f32.mxu0 0.0
      %608 = vmatmul.mubr.f32.gmra.mrb[0].mxu0 %v386
      %v609 = vpop.f32.mrb[0].mxu0
      %v610 = vadd.f32 %v289, %v609
      %v611 = vpop.f32.mrb[0].mxu0
      %612 = vdwg.mxu0
      %v613 = vmax.f32 %v455, 0.0
      %v614 = vmax.f32 %v460, 0.0
      %v615 = vmax.f32 %v465, 0.0
      %v616 = vmax.f32 %v470, 0.0
      %v617 = vmax.f32 %v475, 0.0
      %v618 = vmax.f32 %v480, 0.0
      %v619 = vmax.f32 %v485, 0.0
      %v620 = vmax.f32 %v490, 0.0
      %v621 = vmax.f32 %v495, 0.0
      %v622 = vmax.f32 %v500, 0.0
      %v623 = vmax.f32 %v505, 0.0
      %v624 = vmax.f32 %v510, 0.0
      %v625 = vmax.f32 %v515, 0.0
      %v626 = vmax.f32 %v520, 0.0
      %v627 = vmax.f32 %v525, 0.0
      %v628 = vmax.f32 %v530, 0.0
      %v629 = vmax.f32 %v535, 0.0
      %v630 = vmax.f32 %v540, 0.0
      %v631 = vmax.f32 %v545, 0.0
      %v632 = vmax.f32 %v550, 0.0
      %v633 = vmax.f32 %v555, 0.0
      %v634 = vmax.f32 %v560, 0.0
      %v635 = vmax.f32 %v565, 0.0
      %v636 = vmax.f32 %v570, 0.0
      %v637 = vmax.f32 %v575, 0.0
      %v638 = vmax.f32 %v580, 0.0
      %v639 = vmax.f32 %v585, 0.0
      %v640 = vmax.f32 %v590, 0.0
      %v641 = vmax.f32 %v595, 0.0
      %v642 = vmax.f32 %v600, 0.0
      %v643 = vmax.f32 %v605, 0.0
      %v644 = vmax.f32 %v610, 0.0
      %v645 = vld [vmem:[%s243] sm:$0xff]
      %v646 = vld [vmem:[%s243 + $0x8] sm:$0xff]
      %v647 = vld [vmem:[%s243 + $0x10] sm:$0xff]
      %v648 = vld [vmem:[%s243 + $0x18] sm:$0xff]
      %v649 = vld [vmem:[%s243 + $0x20] sm:$0xff]
      %v650 = vld [vmem:[%s243 + $0x28] sm:$0xff]
      %v651 = vld [vmem:[%s243 + $0x30] sm:$0xff]
      %v652 = vld [vmem:[%s243 + $0x38] sm:$0xff]
      %s653 = sld [smem:[#allocation2]]
      %v654 = vstv %s653
      %v655 = vmul.f32 %v654, %v645
      %v656 = vmul.f32 %v654, %v646
      %v657 = vmul.f32 %v654, %v647
      %v658 = vmul.f32 %v654, %v648
      %v659 = vmul.f32 %v654, %v649
      %v660 = vmul.f32 %v654, %v650
      %v661 = vmul.f32 %v654, %v651
      %v662 = vmul.f32 %v654, %v652
      %v663 = vadd.f32 %v613, %v655
      %v664 = vadd.f32 %v614, %v656
      %v665 = vadd.f32 %v615, %v655
      %v666 = vadd.f32 %v616, %v656
      %v667 = vadd.f32 %v617, %v655
      %v668 = vadd.f32 %v618, %v656
      %v669 = vadd.f32 %v619, %v655
      %v670 = vadd.f32 %v620, %v656
      %v671 = vadd.f32 %v621, %v657
      %v672 = vadd.f32 %v622, %v658
      %v673 = vadd.f32 %v623, %v657
      %v674 = vadd.f32 %v624, %v658
      %v675 = vadd.f32 %v625, %v657
      %v676 = vadd.f32 %v626, %v658
      %v677 = vadd.f32 %v627, %v657
      %v678 = vadd.f32 %v628, %v658
      %v679 = vadd.f32 %v629, %v659
      %v680 = vadd.f32 %v630, %v660
      %v681 = vadd.f32 %v631, %v659
      %v682 = vadd.f32 %v632, %v660
      %v683 = vadd.f32 %v633, %v659
      %v684 = vadd.f32 %v634, %v660
      %v685 = vadd.f32 %v635, %v659
      %v686 = vadd.f32 %v636, %v660
      %v687 = vadd.f32 %v637, %v661
      %v688 = vadd.f32 %v638, %v662
      %v689 = vadd.f32 %v639, %v661
      %v690 = vadd.f32 %v640, %v662
      %v691 = vadd.f32 %v641, %v661
      %v692 = vadd.f32 %v642, %v662
      %v693 = vadd.f32 %v643, %v661
      %v694 = vadd.f32 %v644, %v662
      %695 = vst.msk [vmem:[%s249] sm:$0xff] %vm291, %v663
      %696 = vst.msk [vmem:[%s249 + $0x8] sm:$0xff] %vm291, %v664
      %697 = vst.msk [vmem:[%s249 + $0x10] sm:$0xff] %vm291, %v665
      %698 = vst.msk [vmem:[%s249 + $0x18] sm:$0xff] %vm291, %v666
      %699 = vst.msk [vmem:[%s249 + $0x20] sm:$0xff] %vm291, %v667
      %700 = vst.msk [vmem:[%s249 + $0x28] sm:$0xff] %vm291, %v668
      %701 = vst.msk [vmem:[%s249 + $0x30] sm:$0xff] %vm291, %v669
      %702 = vst.msk [vmem:[%s249 + $0x38] sm:$0xff] %vm291, %v670
      %703 = vst.msk [vmem:[%s249 + $0x40] sm:$0xff] %vm291, %v671
      %704 = vst.msk [vmem:[%s249 + $0x48] sm:$0xff] %vm291, %v672
      %705 = vst.msk [vmem:[%s249 + $0x50] sm:$0xff] %vm291, %v673
      %706 = vst.msk [vmem:[%s249 + $0x58] sm:$0xff] %vm291, %v674
      %707 = vst.msk [vmem:[%s249 + $0x60] sm:$0xff] %vm291, %v675
      %708 = vst.msk [vmem:[%s249 + $0x68] sm:$0xff] %vm291, %v676
      %709 = vst.msk [vmem:[%s249 + $0x70] sm:$0xff] %vm291, %v677
      %710 = vst.msk [vmem:[%s249 + $0x78] sm:$0xff] %vm291, %v678
      %711 = vst.msk [vmem:[%s249 + $0x80] sm:$0xff] %vm291, %v679
      %712 = vst.msk [vmem:[%s249 + $0x88] sm:$0xff] %vm291, %v680
      %713 = vst.msk [vmem:[%s249 + $0x90] sm:$0xff] %vm291, %v681
      %714 = vst.msk [vmem:[%s249 + $0x98] sm:$0xff] %vm291, %v682
      %715 = vst.msk [vmem:[%s249 + $0xa0] sm:$0xff] %vm291, %v683
      %716 = vst.msk [vmem:[%s249 + $0xa8] sm:$0xff] %vm291, %v684
      %717 = vst.msk [vmem:[%s249 + $0xb0] sm:$0xff] %vm291, %v685
      %718 = vst.msk [vmem:[%s249 + $0xb8] sm:$0xff] %vm291, %v686
      %719 = vst.msk [vmem:[%s249 + $0xc0] sm:$0xff] %vm291, %v687
      %720 = vst.msk [vmem:[%s249 + $0xc8] sm:$0xff] %vm291, %v688
      %721 = vst.msk [vmem:[%s249 + $0xd0] sm:$0xff] %vm291, %v689
      %722 = vst.msk [vmem:[%s249 + $0xd8] sm:$0xff] %vm291, %v690
      %723 = vst.msk [vmem:[%s249 + $0xe0] sm:$0xff] %vm291, %v691
      %724 = vst.msk [vmem:[%s249 + $0xe8] sm:$0xff] %vm291, %v692
      %725 = vst.msk [vmem:[%s249 + $0xf0] sm:$0xff] %vm291, %v693
      %726 = vst.msk [vmem:[%s249 + $0xf8] sm:$0xff] %vm291, %v694
      %s727 = smul.u32 32, %s17
      %p728 = scmp.lt.s32.totalorder %s727, 63
      %s729 = scalar_select %p728, %s727, 63
      %s730 = smul.addr %s729, 8
      %s731 = scalar_lea.vmem %s5, %s730
      // Predicated region
      $region41: #{_lambda_.7} parent=39 // pred_check
        %p732 = pneg %p150
      $region42: #{_lambda_.7} parent=39 // pred_check_branch
        %734 = sbr.rel (%p732) target = $region44
      $region43: #{_lambda_.7} parent=39 // pred_region
        %s735 = smul.u32 32, %s17
      $region44: #{_lambda_.7} parent=39 // pred_fallthru
        _
    $region40: #{_lambda_.7} parent=5 // pred_fallthru
      _
    %p736 = scmp.le.s32.totalorder 2, %s12
    // Predicated region
    $region45: #{_lambda_.7} parent=5 // pred_check
      %p737 = pneg %p736
    $region46: #{_lambda_.7} parent=5 // pred_check_branch
      %739 = sbr.rel (%p737) target = $region48
    $region47: #{_lambda_.7} parent=5 // pred_region
      %s740 = ssub.s32 %s12, 2
      // Predicated region
      $region49: #{_lambda_.7} parent=47 // pred_check
        %p741 = pneg %p156
      $region50: #{_lambda_.7} parent=47 // pred_check_branch
        %743 = sbr.rel (%p741) target = $region52
      $region51: #{_lambda_.7} parent=47 // pred_region
        %s744 = smul.u32 32, %s18
        %p745 = scmp.lt.s32.totalorder %s744, 63
        %s746 = scalar_select %p745, %s744, 63
        %s747 = smul.addr %s746, 8
        %s748 = scalar_lea.vmem %s5, %s747
      $region52: #{_lambda_.7} parent=47 // pred_fallthru
        _
    $region48: #{_lambda_.7} parent=5 // pred_fallthru
      _
  $region6: #{_lambda_.7} parent=0 // loop_footer
    %s16 = sadd.s32 1, %s12
  $region7: #{_lambda_.7} parent=0 // loop_footer_branch
    %11 = sbr.rel target = $region3
  $region8: #{_lambda_.7} parent=0 // loop_exit
    _

</llo_original>
